<compile_context>
chip_gen: v6e
topology: v6e:2x2x1
jax: 0.10.0
libtpu: 0.0.40
codegen_flags: <defaults>
</compile_context>

<pallas_src>
import math
from functools import partial

import jax
import jax.numpy as jnp
from jax.experimental import pallas as pl
from jax.experimental.pallas import tpu as pltpu


# --------------------------- tiling helpers ---------------------------------

_TM_MAX = 256            # row tile (multiple of 8)
_TN_MAX = 512            # col tile (multiple of 128)
_VMEM_LIMIT = 48 * 1024 * 1024   # safe on v5e/v6e (128 MiB) and v7x (64 MiB)


def _round_up(x, m):
    return ((x + m - 1) // m) * m


def _pick_tiles(M, N):
    """Choose (tm, Mp, tn, Np): tile sizes and padded extents."""
    if M <= _TM_MAX:
        tm, Mp = M, M                     # single block == full dim (always legal)
    else:
        tm = _TM_MAX
        Mp = _round_up(M, tm)
    if N <= _TN_MAX:
        tn, Np = N, N
    else:
        tn = _TN_MAX
        Np = _round_up(N, tn)             # keep output tiles 128-aligned / lane-dense
    return tm, Mp, tn, Np


def _pad2(a, rows, cols):
    pr, pc = rows - a.shape[0], cols - a.shape[1]
    if pr or pc:
        a = jnp.pad(a, ((0, pr), (0, pc)))
    return a


def _compiler_params(n_parallel_axes):
    return pltpu.CompilerParams(
        dimension_semantics=("parallel",) * n_parallel_axes,
        vmem_limit_bytes=_VMEM_LIMIT,
    )


# --------------------------- Pallas kernels ---------------------------------

def _ln_matmul_kernel(x_ref, g_ref, b_ref, w_ref, bias_ref, o_ref, *, gelu):
    """out = (GELU?)(LayerNorm(x) @ w + bias)  for one (tm, tn) output tile."""
    x = x_ref[...].astype(jnp.float32)
    mean = jnp.mean(x, axis=-1, keepdims=True)
    var = jnp.mean((x - mean) ** 2, axis=-1, keepdims=True)   # unbiased=False
    h = (x - mean) / jnp.sqrt(var + 1e-5)
    h = h * g_ref[...] + b_ref[...]
    acc = jnp.dot(h, w_ref[...], preferred_element_type=jnp.float32) + bias_ref[...]
    if gelu:
        # GPT-2 tanh-approx GELU
        acc = 0.5 * acc * (1.0 + jnp.tanh(
            jnp.float32(math.sqrt(2.0 / math.pi)) * (acc + 0.044715 * acc ** 3)))
    o_ref[...] = acc.astype(o_ref.dtype)


def _matmul_resid_kernel(x_ref, w_ref, bias_ref, res_ref, o_ref):
    """out = x @ w + bias + residual  for one (tm, tn) output tile."""
    acc = jnp.dot(x_ref[...], w_ref[...], preferred_element_type=jnp.float32)
    o_ref[...] = (acc + bias_ref[...] + res_ref[...]).astype(o_ref.dtype)


def _attn_kernel(qkv_ref, o_ref, *, n_heads, d_head):
    """Causal multi-head attention for one batch row.

    qkv_ref: (1, T, 3*D) with columns [q | k | v]; heads sliced in-kernel.
    Output written as a single lane-dense (T, D) tile.
    """
    T = o_ref.shape[1]
    D = n_heads * d_head
    qkv = qkv_ref[0].astype(jnp.float32)                       # (T, 3D)

    row = jax.lax.broadcasted_iota(jnp.int32, (T, T), 0)
    col = jax.lax.broadcasted_iota(jnp.int32, (T, T), 1)
    neg = jnp.float32(-1e30)                                   # finite, NaN-safe
    scale = jnp.float32(1.0 / math.sqrt(d_head))

    outs = []
    for h in range(n_heads):                                   # static unroll
        q = qkv[:, h * d_head:(h + 1) * d_head] * scale        # fold 1/sqrt(Dh) into q
        k = qkv[:, D + h * d_head:D + (h + 1) * d_head]
        v = qkv[:, 2 * D + h * d_head:2 * D + (h + 1) * d_head]
        s = jnp.einsum("qd,kd->qk", q, k, preferred_element_type=jnp.float32)
        s = jnp.where(col > row, neg, s)                       # causal mask
        m = jnp.max(s, axis=-1, keepdims=True)
        p = jnp.exp(s - m)
        p = p / jnp.sum(p, axis=-1, keepdims=True)
        outs.append(jnp.dot(p, v, preferred_element_type=jnp.float32))
    # TODO(synk): for long contexts, KV-tile with an online-softmax accumulator
    # instead of materializing the full (T, T) scores per head.
    o_ref[0] = jnp.concatenate(outs, axis=-1).astype(o_ref.dtype)


# --------------------------- kernel wrappers ---------------------------------

def ln_matmul(x, gamma, beta, w, bias, *, gelu=False):
    """(GELU?)(LayerNorm(x) @ w + bias), tiled over (M, N)."""
    M, K = x.shape
    N = w.shape[1]
    tm, Mp, tn, Np = _pick_tiles(M, N)

    xp = _pad2(x, Mp, K)
    wp = _pad2(w, K, Np)
    bp = _pad2(bias.reshape(1, N), 1, Np)
    g2 = gamma.reshape(1, K)
    b2 = beta.reshape(1, K)

    out = pl.pallas_call(
        partial(_ln_matmul_kernel, gelu=gelu),
        out_shape=jax.ShapeDtypeStruct((Mp, Np), x.dtype),
        grid=(Mp // tm, Np // tn),
        in_specs=[
            pl.BlockSpec((tm, K), lambda i, j: (i, 0)),
            pl.BlockSpec((1, K), lambda i, j: (0, 0)),
            pl.BlockSpec((1, K), lambda i, j: (0, 0)),
            pl.BlockSpec((K, tn), lambda i, j: (0, j)),
            pl.BlockSpec((1, tn), lambda i, j: (0, j)),
        ],
        out_specs=pl.BlockSpec((tm, tn), lambda i, j: (i, j)),
        compiler_params=_compiler_params(2),
    )(xp, g2, b2, wp, bp)

    if Mp != M or Np != N:
        out = out[:M, :N]
    return out


def matmul_resid(x, w, bias, residual):
    """x @ w + bias + residual, tiled over (M, N)."""
    M, K = x.shape
    N = w.shape[1]
    tm, Mp, tn, Np = _pick_tiles(M, N)

    xp = _pad2(x, Mp, K)
    wp = _pad2(w, K, Np)
    bp = _pad2(bias.reshape(1, N), 1, Np)
    rp = _pad2(residual, Mp, Np)

    out = pl.pallas_call(
        _matmul_resid_kernel,
        out_shape=jax.ShapeDtypeStruct((Mp, Np), x.dtype),
        grid=(Mp // tm, Np // tn),
        in_specs=[
            pl.BlockSpec((tm, K), lambda i, j: (i, 0)),
            pl.BlockSpec((K, tn), lambda i, j: (0, j)),
            pl.BlockSpec((1, tn), lambda i, j: (0, j)),
            pl.BlockSpec((tm, tn), lambda i, j: (i, j)),
        ],
        out_specs=pl.BlockSpec((tm, tn), lambda i, j: (i, j)),
        compiler_params=_compiler_params(2),
    )(xp, wp, bp, rp)

    if Mp != M or Np != N:
        out = out[:M, :N]
    return out


def causal_attention(qkv, n_heads):
    """qkv: (B, T, 3*D) fused projections -> (B, T, D) attention context."""
    B, T, three_d = qkv.shape
    D = three_d // 3
    d_head = D // n_heads
    return pl.pallas_call(
        partial(_attn_kernel, n_heads=n_heads, d_head=d_head),
        out_shape=jax.ShapeDtypeStruct((B, T, D), qkv.dtype),
        grid=(B,),
        in_specs=[pl.BlockSpec((1, T, three_d), lambda b: (b, 0, 0))],
        out_specs=pl.BlockSpec((1, T, D), lambda b: (b, 0, 0)),
        compiler_params=_compiler_params(1),
    )(qkv)


# --------------------------- Model (glue) ------------------------------------

def transformer_block(x2, p, n_heads, B, T):
    D = x2.shape[1]

    # ---- Multi-head causal self-attention (LN1 fused into QKV GEMM) ----
    qkv = ln_matmul(x2, p["ln1_g"], p["ln1_b"], p["w_qkv"], p["b_qkv"])
    ctx = causal_attention(qkv.reshape(B, T, 3 * D), n_heads).reshape(B * T, D)
    x2 = matmul_resid(ctx, p["wo"], p["bo"], x2)       # out-proj + residual (dropout=0)

    # ---- FeedForward (LN2 + GELU fused, residual fused into 2nd GEMM) ----
    h = ln_matmul(x2, p["ln2_g"], p["ln2_b"], p["w1"], p["b1"], gelu=True)
    x2 = matmul_resid(h, p["w2"], p["b2"], x2)         # + residual (dropout=0)
    return x2


def gpt2_forward(params, in_idx, cfg):
    B, T = in_idx.shape
    D, V = cfg["emb_dim"], cfg["vocab_size"]

    # Embedding lookup + positional add stay as plain JAX (gather, not a GEMM).
    tok = jnp.take(params["tok_emb"], in_idx, axis=0)           # (B, T, D)
    x = tok + params["pos_emb"][:T][None, :, :]
    # drop_emb: identity (drop_rate = 0.0 / inference)

    x2 = x.reshape(B * T, D)
    for blk in params["blocks"]:
        x2 = transformer_block(x2, blk, cfg["n_heads"], B, T)

    # Final LayerNorm fused into the (vocab-tiled) logits GEMM; out_head has no bias.
    zero_bias = jnp.zeros((V,), x2.dtype)
    logits = ln_matmul(x2, params["final_ln_g"], params["final_ln_b"],
                       params["out_head"], zero_bias)
    return logits.reshape(B, T, V)


def init_params(key, cfg):
    D, V, C = cfg["emb_dim"], cfg["vocab_size"], cfg["context_length"]
    H4 = 4 * D
    keys = jax.random.split(key, 3 + cfg["n_layers"])

    def norm(k, shape, scale=0.02):
        return (scale * jax.random.normal(k, shape)).astype(jnp.float32)

    params = {
        "tok_emb": norm(keys[0], (V, D)),
        "pos_emb": norm(keys[1], (C, D)),
        "out_head": norm(keys[2], (D, V)),
        "final_ln_g": jnp.ones((D,), jnp.float32),
        "final_ln_b": jnp.zeros((D,), jnp.float32),
        "blocks": [],
    }
    for l in range(cfg["n_layers"]):
        lk = jax.random.split(keys[3 + l], 4)
        params["blocks"].append({
            "ln1_g": jnp.ones((D,), jnp.float32), "ln1_b": jnp.zeros((D,), jnp.float32),
            # fused [Wq | Wk | Wv] projection
            "w_qkv": norm(lk[0], (D, 3 * D)), "b_qkv": jnp.zeros((3 * D,), jnp.float32),
            "wo": norm(lk[1], (D, D)), "bo": jnp.zeros((D,), jnp.float32),
            "ln2_g": jnp.ones((D,), jnp.float32), "ln2_b": jnp.zeros((D,), jnp.float32),
            "w1": norm(lk[2], (D, H4)), "b1": jnp.zeros((H4,), jnp.float32),
            "w2": norm(lk[3], (H4, D)), "b2": jnp.zeros((D,), jnp.float32),
        })
    return params


if __name__ == "__main__":
    cfg = {
        "vocab_size": 128,
        "emb_dim": 32,
        "context_length": 16,
        "drop_rate": 0.0,     # dropout -> identity
        "n_layers": 2,
        "n_heads": 4,
        "qkv_bias": True,
    }
    key = jax.random.PRNGKey(0)
    pkey, ikey = jax.random.split(key)
    params = init_params(pkey, cfg)

    B, T = 2, 8
    in_idx = jax.random.randint(ikey, (B, T), 0, cfg["vocab_size"], dtype=jnp.int32)

    fwd = jax.jit(partial(gpt2_forward, cfg=cfg))
    logits = fwd(params, in_idx)
    jax.block_until_ready(logits)
    assert logits.shape == (B, T, cfg["vocab_size"])
    assert bool(jnp.all(jnp.isfinite(logits)))
    print("KERNEL_OK")
</pallas_src>

<mosaic_0001>
module attributes {stable_mosaic.version = 11 : i64} {
  func.func @_ln_matmul_kernel(%arg0: i32, %arg1: i32, %arg2: memref<16x32xf32, #tpu.memory_space<vmem>>, %arg3: memref<1x32xf32, #tpu.memory_space<vmem>>, %arg4: memref<1x32xf32, #tpu.memory_space<vmem>>, %arg5: memref<32x96xf32, #tpu.memory_space<vmem>>, %arg6: memref<1x96xf32, #tpu.memory_space<vmem>>, %arg7: memref<16x96xf32, #tpu.memory_space<vmem>>) attributes {dimension_semantics = [#tpu.dimension_semantics<parallel>, #tpu.dimension_semantics<parallel>], iteration_bounds = array<i64: 1, 1>, scalar_prefetch = 0 : i64, scratch_operands = 0 : i64, tpu.core_type = #tpu.core_type<tc>, window_params = [{transform_indices = @transform_0, window_bounds = array<i64: 16, 32>}, {pipeline_mode = #tpu.pipeline_mode<synchronous>, transform_indices = @transform_1, window_bounds = array<i64: 1, 32>}, {pipeline_mode = #tpu.pipeline_mode<synchronous>, transform_indices = @transform_2, window_bounds = array<i64: 1, 32>}, {transform_indices = @transform_3, window_bounds = array<i64: 32, 96>}, {transform_indices = @transform_4, window_bounds = array<i64: 1, 96>}, {transform_indices = @transform_5, window_bounds = array<i64: 16, 96>}]} {
    %c0 = arith.constant 0 : index
    %c0_0 = arith.constant 0 : index
    %0 = vector.load %arg2[%c0, %c0_0] : memref<16x32xf32, #tpu.memory_space<vmem>>, vector<16x32xf32>
    %cst = arith.constant dense<0.000000e+00> : vector<16xf32>
    %1 = vector.multi_reduction <add>, %0, %cst [1] : vector<16x32xf32> to vector<16xf32>
    %2 = vector.shape_cast %1 : vector<16xf32> to vector<16x1xf32>
    %cst_1 = arith.constant 3.200000e+01 : f32
    %3 = vector.broadcast %cst_1 : f32 to vector<16x1xf32>
    %4 = arith.divf %2, %3 : vector<16x1xf32>
    %5 = vector.broadcast %4 : vector<16x1xf32> to vector<16x32xf32>
    %6 = arith.subf %0, %5 : vector<16x32xf32>
    %7 = arith.mulf %6, %6 : vector<16x32xf32>
    %cst_2 = arith.constant dense<0.000000e+00> : vector<16xf32>
    %8 = vector.multi_reduction <add>, %7, %cst_2 [1] : vector<16x32xf32> to vector<16xf32>
    %9 = vector.shape_cast %8 : vector<16xf32> to vector<16x1xf32>
    %cst_3 = arith.constant 3.200000e+01 : f32
    %10 = vector.broadcast %cst_3 : f32 to vector<16x1xf32>
    %11 = arith.divf %9, %10 : vector<16x1xf32>
    %12 = vector.broadcast %4 : vector<16x1xf32> to vector<16x32xf32>
    %13 = arith.subf %0, %12 : vector<16x32xf32>
    %cst_4 = arith.constant 9.99999974E-6 : f32
    %14 = vector.broadcast %cst_4 : f32 to vector<16x1xf32>
    %15 = arith.addf %11, %14 : vector<16x1xf32>
    %16 = math.sqrt %15 : vector<16x1xf32>
    %17 = vector.broadcast %16 : vector<16x1xf32> to vector<16x32xf32>
    %18 = arith.divf %13, %17 : vector<16x32xf32>
    %c0_5 = arith.constant 0 : index
    %c0_6 = arith.constant 0 : index
    %19 = vector.load %arg3[%c0_5, %c0_6] : memref<1x32xf32, #tpu.memory_space<vmem>>, vector<1x32xf32>
    %20 = vector.broadcast %19 : vector<1x32xf32> to vector<16x32xf32>
    %21 = arith.mulf %18, %20 : vector<16x32xf32>
    %c0_7 = arith.constant 0 : index
    %c0_8 = arith.constant 0 : index
    %22 = vector.load %arg4[%c0_7, %c0_8] : memref<1x32xf32, #tpu.memory_space<vmem>>, vector<1x32xf32>
    %23 = vector.broadcast %22 : vector<1x32xf32> to vector<16x32xf32>
    %24 = arith.addf %21, %23 : vector<16x32xf32>
    %c0_9 = arith.constant 0 : index
    %c0_10 = arith.constant 0 : index
    %25 = vector.load %arg5[%c0_9, %c0_10] : memref<32x96xf32, #tpu.memory_space<vmem>>, vector<32x96xf32>
    %cst_11 = arith.constant dense<0.000000e+00> : vector<16x96xf32>
    %26 = tpu.matmul %24, %25, %cst_11 {dimension_numbers = #tpu.dot_dimension_numbers<[1], [0], [0], [1], [0, 0, 1, 1], [], []>} : vector<16x32xf32>, vector<32x96xf32>, vector<16x96xf32> -> vector<16x96xf32>
    %c0_12 = arith.constant 0 : index
    %c0_13 = arith.constant 0 : index
    %27 = vector.load %arg6[%c0_12, %c0_13] : memref<1x96xf32, #tpu.memory_space<vmem>>, vector<1x96xf32>
    %28 = vector.broadcast %27 : vector<1x96xf32> to vector<16x96xf32>
    %29 = arith.addf %26, %28 : vector<16x96xf32>
    %c0_14 = arith.constant 0 : index
    %c0_15 = arith.constant 0 : index
    %30 = vector.load %arg7[%c0_14, %c0_15] : memref<16x96xf32, #tpu.memory_space<vmem>>, vector<16x96xf32>
    tpu.vector_store %arg7[%c0_14, %c0_15], %29 {strides = array<i32>} : memref<16x96xf32, #tpu.memory_space<vmem>>, vector<16x96xf32>,
    return
  }
  func.func @transform_0(%arg0: i32, %arg1: i32) -> (i32, i32) {
    %c0_i32 = arith.constant 0 : i32
    %c0_i32_0 = arith.constant 0 : i32
    return %arg0, %c0_i32 : i32, i32
  }
  func.func @transform_1(%arg0: i32, %arg1: i32) -> (i32, i32) {
    %c0_i32 = arith.constant 0 : i32
    %c0_i32_0 = arith.constant 0 : i32
    %c0_i32_1 = arith.constant 0 : i32
    return %c0_i32, %c0_i32_0 : i32, i32
  }
  func.func @transform_2(%arg0: i32, %arg1: i32) -> (i32, i32) {
    %c0_i32 = arith.constant 0 : i32
    %c0_i32_0 = arith.constant 0 : i32
    %c0_i32_1 = arith.constant 0 : i32
    return %c0_i32, %c0_i32_0 : i32, i32
  }
  func.func @transform_3(%arg0: i32, %arg1: i32) -> (i32, i32) {
    %c0_i32 = arith.constant 0 : i32
    %c0_i32_0 = arith.constant 0 : i32
    return %c0_i32, %arg1 : i32, i32
  }
  func.func @transform_4(%arg0: i32, %arg1: i32) -> (i32, i32) {
    %c0_i32 = arith.constant 0 : i32
    %c0_i32_0 = arith.constant 0 : i32
    return %c0_i32, %arg1 : i32, i32
  }
  func.func @transform_5(%arg0: i32, %arg1: i32) -> (i32, i32) {
    %c0_i32 = arith.constant 0 : i32
    return %arg0, %arg1 : i32, i32
  }
}

module attributes {stable_mosaic.version = 11 : i64} {
  func.func @_matmul_resid_kernel(%arg0: i32, %arg1: i32, %arg2: memref<16x32xf32, #tpu.memory_space<vmem>>, %arg3: memref<32x32xf32, #tpu.memory_space<vmem>>, %arg4: memref<1x32xf32, #tpu.memory_space<vmem>>, %arg5: memref<16x32xf32, #tpu.memory_space<vmem>>, %arg6: memref<16x32xf32, #tpu.memory_space<vmem>>) attributes {dimension_semantics = [#tpu.dimension_semantics<parallel>, #tpu.dimension_semantics<parallel>], iteration_bounds = array<i64: 1, 1>, scalar_prefetch = 0 : i64, scratch_operands = 0 : i64, tpu.core_type = #tpu.core_type<tc>, window_params = [{transform_indices = @transform_0, window_bounds = array<i64: 16, 32>}, {transform_indices = @transform_1, window_bounds = array<i64: 32, 32>}, {transform_indices = @transform_2, window_bounds = array<i64: 1, 32>}, {transform_indices = @transform_3, window_bounds = array<i64: 16, 32>}, {transform_indices = @transform_4, window_bounds = array<i64: 16, 32>}]} {
    %c0 = arith.constant 0 : index
    %c0_0 = arith.constant 0 : index
    %0 = vector.load %arg2[%c0, %c0_0] : memref<16x32xf32, #tpu.memory_space<vmem>>, vector<16x32xf32>
    %c0_1 = arith.constant 0 : index
    %c0_2 = arith.constant 0 : index
    %1 = vector.load %arg3[%c0_1, %c0_2] : memref<32x32xf32, #tpu.memory_space<vmem>>, vector<32x32xf32>
    %cst = arith.constant dense<0.000000e+00> : vector<16x32xf32>
    %2 = tpu.matmul %0, %1, %cst {dimension_numbers = #tpu.dot_dimension_numbers<[1], [0], [0], [1], [0, 0, 1, 1], [], []>} : vector<16x32xf32>, vector<32x32xf32>, vector<16x32xf32> -> vector<16x32xf32>
    %c0_3 = arith.constant 0 : index
    %c0_4 = arith.constant 0 : index
    %3 = vector.load %arg4[%c0_3, %c0_4] : memref<1x32xf32, #tpu.memory_space<vmem>>, vector<1x32xf32>
    %4 = vector.broadcast %3 : vector<1x32xf32> to vector<16x32xf32>
    %5 = arith.addf %2, %4 : vector<16x32xf32>
    %c0_5 = arith.constant 0 : index
    %c0_6 = arith.constant 0 : index
    %6 = vector.load %arg5[%c0_5, %c0_6] : memref<16x32xf32, #tpu.memory_space<vmem>>, vector<16x32xf32>
    %7 = arith.addf %5, %6 : vector<16x32xf32>
    %c0_7 = arith.constant 0 : index
    %c0_8 = arith.constant 0 : index
    %8 = vector.load %arg6[%c0_7, %c0_8] : memref<16x32xf32, #tpu.memory_space<vmem>>, vector<16x32xf32>
    tpu.vector_store %arg6[%c0_7, %c0_8], %7 {strides = array<i32>} : memref<16x32xf32, #tpu.memory_space<vmem>>, vector<16x32xf32>,
    return
  }
  func.func @transform_0(%arg0: i32, %arg1: i32) -> (i32, i32) {
    %c0_i32 = arith.constant 0 : i32
    %c0_i32_0 = arith.constant 0 : i32
    return %arg0, %c0_i32 : i32, i32
  }
  func.func @transform_1(%arg0: i32, %arg1: i32) -> (i32, i32) {
    %c0_i32 = arith.constant 0 : i32
    %c0_i32_0 = arith.constant 0 : i32
    return %c0_i32, %arg1 : i32, i32
  }
  func.func @transform_2(%arg0: i32, %arg1: i32) -> (i32, i32) {
    %c0_i32 = arith.constant 0 : i32
    %c0_i32_0 = arith.constant 0 : i32
    return %c0_i32, %arg1 : i32, i32
  }
  func.func @transform_3(%arg0: i32, %arg1: i32) -> (i32, i32) {
    %c0_i32 = arith.constant 0 : i32
    return %arg0, %arg1 : i32, i32
  }
  func.func @transform_4(%arg0: i32, %arg1: i32) -> (i32, i32) {
    %c0_i32 = arith.constant 0 : i32
    return %arg0, %arg1 : i32, i32
  }
}

module attributes {stable_mosaic.version = 11 : i64} {
  func.func @_ln_matmul_kernel(%arg0: i32, %arg1: i32, %arg2: memref<16x32xf32, #tpu.memory_space<vmem>>, %arg3: memref<1x32xf32, #tpu.memory_space<vmem>>, %arg4: memref<1x32xf32, #tpu.memory_space<vmem>>, %arg5: memref<32x128xf32, #tpu.memory_space<vmem>>, %arg6: memref<1x128xf32, #tpu.memory_space<vmem>>, %arg7: memref<16x128xf32, #tpu.memory_space<vmem>>) attributes {dimension_semantics = [#tpu.dimension_semantics<parallel>, #tpu.dimension_semantics<parallel>], iteration_bounds = array<i64: 1, 1>, scalar_prefetch = 0 : i64, scratch_operands = 0 : i64, tpu.core_type = #tpu.core_type<tc>, window_params = [{transform_indices = @transform_0, window_bounds = array<i64: 16, 32>}, {pipeline_mode = #tpu.pipeline_mode<synchronous>, transform_indices = @transform_1, window_bounds = array<i64: 1, 32>}, {pipeline_mode = #tpu.pipeline_mode<synchronous>, transform_indices = @transform_2, window_bounds = array<i64: 1, 32>}, {transform_indices = @transform_3, window_bounds = array<i64: 32, 128>}, {transform_indices = @transform_4, window_bounds = array<i64: 1, 128>}, {transform_indices = @transform_5, window_bounds = array<i64: 16, 128>}]} {
    %c0 = arith.constant 0 : index
    %c0_0 = arith.constant 0 : index
    %0 = vector.load %arg2[%c0, %c0_0] : memref<16x32xf32, #tpu.memory_space<vmem>>, vector<16x32xf32>
    %cst = arith.constant dense<0.000000e+00> : vector<16xf32>
    %1 = vector.multi_reduction <add>, %0, %cst [1] : vector<16x32xf32> to vector<16xf32>
    %2 = vector.shape_cast %1 : vector<16xf32> to vector<16x1xf32>
    %cst_1 = arith.constant 3.200000e+01 : f32
    %3 = vector.broadcast %cst_1 : f32 to vector<16x1xf32>
    %4 = arith.divf %2, %3 : vector<16x1xf32>
    %5 = vector.broadcast %4 : vector<16x1xf32> to vector<16x32xf32>
    %6 = arith.subf %0, %5 : vector<16x32xf32>
    %7 = arith.mulf %6, %6 : vector<16x32xf32>
    %cst_2 = arith.constant dense<0.000000e+00> : vector<16xf32>
    %8 = vector.multi_reduction <add>, %7, %cst_2 [1] : vector<16x32xf32> to vector<16xf32>
    %9 = vector.shape_cast %8 : vector<16xf32> to vector<16x1xf32>
    %cst_3 = arith.constant 3.200000e+01 : f32
    %10 = vector.broadcast %cst_3 : f32 to vector<16x1xf32>
    %11 = arith.divf %9, %10 : vector<16x1xf32>
    %12 = vector.broadcast %4 : vector<16x1xf32> to vector<16x32xf32>
    %13 = arith.subf %0, %12 : vector<16x32xf32>
    %cst_4 = arith.constant 9.99999974E-6 : f32
    %14 = vector.broadcast %cst_4 : f32 to vector<16x1xf32>
    %15 = arith.addf %11, %14 : vector<16x1xf32>
    %16 = math.sqrt %15 : vector<16x1xf32>
    %17 = vector.broadcast %16 : vector<16x1xf32> to vector<16x32xf32>
    %18 = arith.divf %13, %17 : vector<16x32xf32>
    %c0_5 = arith.constant 0 : index
    %c0_6 = arith.constant 0 : index
    %19 = vector.load %arg3[%c0_5, %c0_6] : memref<1x32xf32, #tpu.memory_space<vmem>>, vector<1x32xf32>
    %20 = vector.broadcast %19 : vector<1x32xf32> to vector<16x32xf32>
    %21 = arith.mulf %18, %20 : vector<16x32xf32>
    %c0_7 = arith.constant 0 : index
    %c0_8 = arith.constant 0 : index
    %22 = vector.load %arg4[%c0_7, %c0_8] : memref<1x32xf32, #tpu.memory_space<vmem>>, vector<1x32xf32>
    %23 = vector.broadcast %22 : vector<1x32xf32> to vector<16x32xf32>
    %24 = arith.addf %21, %23 : vector<16x32xf32>
    %c0_9 = arith.constant 0 : index
    %c0_10 = arith.constant 0 : index
    %25 = vector.load %arg5[%c0_9, %c0_10] : memref<32x128xf32, #tpu.memory_space<vmem>>, vector<32x128xf32>
    %cst_11 = arith.constant dense<0.000000e+00> : vector<16x128xf32>
    %26 = tpu.matmul %24, %25, %cst_11 {dimension_numbers = #tpu.dot_dimension_numbers<[1], [0], [0], [1], [0, 0, 1, 1], [], []>} : vector<16x32xf32>, vector<32x128xf32>, vector<16x128xf32> -> vector<16x128xf32>
    %c0_12 = arith.constant 0 : index
    %c0_13 = arith.constant 0 : index
    %27 = vector.load %arg6[%c0_12, %c0_13] : memref<1x128xf32, #tpu.memory_space<vmem>>, vector<1x128xf32>
    %28 = vector.broadcast %27 : vector<1x128xf32> to vector<16x128xf32>
    %29 = arith.addf %26, %28 : vector<16x128xf32>
    %cst_14 = arith.constant 5.000000e-01 : f32
    %30 = vector.broadcast %cst_14 : f32 to vector<16x128xf32>
    %31 = arith.mulf %30, %29 : vector<16x128xf32>
    %32 = arith.mulf %29, %29 : vector<16x128xf32>
    %33 = arith.mulf %29, %32 : vector<16x128xf32>
    %cst_15 = arith.constant 4.471500e-02 : f32
    %34 = vector.broadcast %cst_15 : f32 to vector<16x128xf32>
    %35 = arith.mulf %34, %33 : vector<16x128xf32>
    %36 = arith.addf %29, %35 : vector<16x128xf32>
    %cst_16 = arith.constant 0.797884583 : f32
    %37 = vector.broadcast %cst_16 : f32 to vector<16x128xf32>
    %38 = arith.mulf %37, %36 : vector<16x128xf32>
    %39 = math.tanh %38 : vector<16x128xf32>
    %cst_17 = arith.constant 1.000000e+00 : f32
    %40 = vector.broadcast %cst_17 : f32 to vector<16x128xf32>
    %41 = arith.addf %40, %39 : vector<16x128xf32>
    %42 = arith.mulf %31, %41 : vector<16x128xf32>
    %c0_18 = arith.constant 0 : index
    %c0_19 = arith.constant 0 : index
    %43 = vector.load %arg7[%c0_18, %c0_19] : memref<16x128xf32, #tpu.memory_space<vmem>>, vector<16x128xf32>
    tpu.vector_store %arg7[%c0_18, %c0_19], %42 {strides = array<i32>} : memref<16x128xf32, #tpu.memory_space<vmem>>, vector<16x128xf32>,
    return
  }
  func.func @transform_0(%arg0: i32, %arg1: i32) -> (i32, i32) {
    %c0_i32 = arith.constant 0 : i32
    %c0_i32_0 = arith.constant 0 : i32
    return %arg0, %c0_i32 : i32, i32
  }
  func.func @transform_1(%arg0: i32, %arg1: i32) -> (i32, i32) {
    %c0_i32 = arith.constant 0 : i32
    %c0_i32_0 = arith.constant 0 : i32
    %c0_i32_1 = arith.constant 0 : i32
    return %c0_i32, %c0_i32_0 : i32, i32
  }
  func.func @transform_2(%arg0: i32, %arg1: i32) -> (i32, i32) {
    %c0_i32 = arith.constant 0 : i32
    %c0_i32_0 = arith.constant 0 : i32
    %c0_i32_1 = arith.constant 0 : i32
    return %c0_i32, %c0_i32_0 : i32, i32
  }
  func.func @transform_3(%arg0: i32, %arg1: i32) -> (i32, i32) {
    %c0_i32 = arith.constant 0 : i32
    %c0_i32_0 = arith.constant 0 : i32
    return %c0_i32, %arg1 : i32, i32
  }
  func.func @transform_4(%arg0: i32, %arg1: i32) -> (i32, i32) {
    %c0_i32 = arith.constant 0 : i32
    %c0_i32_0 = arith.constant 0 : i32
    return %c0_i32, %arg1 : i32, i32
  }
  func.func @transform_5(%arg0: i32, %arg1: i32) -> (i32, i32) {
    %c0_i32 = arith.constant 0 : i32
    return %arg0, %arg1 : i32, i32
  }
}

module attributes {stable_mosaic.version = 11 : i64} {
  func.func @_attn_kernel(%arg0: i32, %arg1: memref<1x8x96xf32, #tpu.memory_space<vmem>>, %arg2: memref<1x8x32xf32, #tpu.memory_space<vmem>>) attributes {dimension_semantics = [#tpu.dimension_semantics<parallel>], iteration_bounds = array<i64: 2>, scalar_prefetch = 0 : i64, scratch_operands = 0 : i64, tpu.core_type = #tpu.core_type<tc>, window_params = [{transform_indices = @transform_0, window_bounds = array<i64: 1, 8, 96>}, {transform_indices = @transform_1, window_bounds = array<i64: 1, 8, 32>}]} {
    %c0 = arith.constant 0 : index
    %c0_0 = arith.constant 0 : index
    %c0_1 = arith.constant 0 : index
    %0 = vector.load %arg1[%c0, %c0_0, %c0_1] : memref<1x8x96xf32, #tpu.memory_space<vmem>>, vector<1x8x96xf32>
    %1 = vector.shape_cast %0 : vector<1x8x96xf32> to vector<8x96xf32>
    %2 = tpu.iota {dimensions = array<i32: 0>} : vector<8x8xi32>
    %3 = tpu.iota {dimensions = array<i32: 1>} : vector<8x8xi32>
    %4 = vector.extract_strided_slice %1 {offsets = [0, 0], sizes = [8, 8], strides = [1, 1]} : vector<8x96xf32> to vector<8x8xf32>
    %cst = arith.constant 0.353553385 : f32
    %5 = vector.broadcast %cst : f32 to vector<8x8xf32>
    %6 = arith.mulf %4, %5 : vector<8x8xf32>
    %7 = vector.extract_strided_slice %1 {offsets = [0, 32], sizes = [8, 8], strides = [1, 1]} : vector<8x96xf32> to vector<8x8xf32>
    %8 = vector.extract_strided_slice %1 {offsets = [0, 64], sizes = [8, 8], strides = [1, 1]} : vector<8x96xf32> to vector<8x8xf32>
    "tpu.trace_start"() <{level = 10 : i32, message = "qd,kd->qk"}> : () -> ()
    %cst_2 = arith.constant dense<0.000000e+00> : vector<8x8xf32>
    %9 = tpu.matmul %6, %7, %cst_2 {dimension_numbers = #tpu.dot_dimension_numbers<[1], [1], [0], [0], [0, 0, 1, 0], [], []>} : vector<8x8xf32>, vector<8x8xf32>, vector<8x8xf32> -> vector<8x8xf32>
    "tpu.trace_stop"() : () -> ()
    %10 = arith.cmpi sgt, %3, %2 : vector<8x8xi32>
    %cst_3 = arith.constant -1.000000e+30 : f32
    %11 = vector.broadcast %cst_3 : f32 to vector<8x8xf32>
    %12 = arith.select %10, %11, %9 : vector<8x8xi1>, vector<8x8xf32>
    %cst_4 = arith.constant dense<0xFF800000> : vector<8xf32>
    %13 = vector.multi_reduction <maximumf>, %12, %cst_4 [1] : vector<8x8xf32> to vector<8xf32>
    %14 = vector.shape_cast %13 : vector<8xf32> to vector<8x1xf32>
    %15 = vector.broadcast %14 : vector<8x1xf32> to vector<8x8xf32>
    %16 = arith.subf %12, %15 : vector<8x8xf32>
    %17 = math.exp %16 : vector<8x8xf32>
    %cst_5 = arith.constant dense<0.000000e+00> : vector<8xf32>
    %18 = vector.multi_reduction <add>, %17, %cst_5 [1] : vector<8x8xf32> to vector<8xf32>
    %19 = vector.shape_cast %18 : vector<8xf32> to vector<8x1xf32>
    %20 = vector.broadcast %19 : vector<8x1xf32> to vector<8x8xf32>
    %21 = arith.divf %17, %20 : vector<8x8xf32>
    %cst_6 = arith.constant dense<0.000000e+00> : vector<8x8xf32>
    %22 = tpu.matmul %21, %8, %cst_6 {dimension_numbers = #tpu.dot_dimension_numbers<[1], [0], [0], [1], [0, 0, 1, 1], [], []>} : vector<8x8xf32>, vector<8x8xf32>, vector<8x8xf32> -> vector<8x8xf32>
    %23 = vector.extract_strided_slice %1 {offsets = [0, 8], sizes = [8, 8], strides = [1, 1]} : vector<8x96xf32> to vector<8x8xf32>
    %cst_7 = arith.constant 0.353553385 : f32
    %24 = vector.broadcast %cst_7 : f32 to vector<8x8xf32>
    %25 = arith.mulf %23, %24 : vector<8x8xf32>
    %26 = vector.extract_strided_slice %1 {offsets = [0, 40], sizes = [8, 8], strides = [1, 1]} : vector<8x96xf32> to vector<8x8xf32>
    %27 = vector.extract_strided_slice %1 {offsets = [0, 72], sizes = [8, 8], strides = [1, 1]} : vector<8x96xf32> to vector<8x8xf32>
    "tpu.trace_start"() <{level = 10 : i32, message = "qd,kd->qk"}> : () -> ()
    %cst_8 = arith.constant dense<0.000000e+00> : vector<8x8xf32>
    %28 = tpu.matmul %25, %26, %cst_8 {dimension_numbers = #tpu.dot_dimension_numbers<[1], [1], [0], [0], [0, 0, 1, 0], [], []>} : vector<8x8xf32>, vector<8x8xf32>, vector<8x8xf32> -> vector<8x8xf32>
    "tpu.trace_stop"() : () -> ()
    %29 = arith.cmpi sgt, %3, %2 : vector<8x8xi32>
    %cst_9 = arith.constant -1.000000e+30 : f32
    %30 = vector.broadcast %cst_9 : f32 to vector<8x8xf32>
    %31 = arith.select %29, %30, %28 : vector<8x8xi1>, vector<8x8xf32>
    %cst_10 = arith.constant dense<0xFF800000> : vector<8xf32>
    %32 = vector.multi_reduction <maximumf>, %31, %cst_10 [1] : vector<8x8xf32> to vector<8xf32>
    %33 = vector.shape_cast %32 : vector<8xf32> to vector<8x1xf32>
    %34 = vector.broadcast %33 : vector<8x1xf32> to vector<8x8xf32>
    %35 = arith.subf %31, %34 : vector<8x8xf32>
    %36 = math.exp %35 : vector<8x8xf32>
    %cst_11 = arith.constant dense<0.000000e+00> : vector<8xf32>
    %37 = vector.multi_reduction <add>, %36, %cst_11 [1] : vector<8x8xf32> to vector<8xf32>
    %38 = vector.shape_cast %37 : vector<8xf32> to vector<8x1xf32>
    %39 = vector.broadcast %38 : vector<8x1xf32> to vector<8x8xf32>
    %40 = arith.divf %36, %39 : vector<8x8xf32>
    %cst_12 = arith.constant dense<0.000000e+00> : vector<8x8xf32>
    %41 = tpu.matmul %40, %27, %cst_12 {dimension_numbers = #tpu.dot_dimension_numbers<[1], [0], [0], [1], [0, 0, 1, 1], [], []>} : vector<8x8xf32>, vector<8x8xf32>, vector<8x8xf32> -> vector<8x8xf32>
    %42 = vector.extract_strided_slice %1 {offsets = [0, 16], sizes = [8, 8], strides = [1, 1]} : vector<8x96xf32> to vector<8x8xf32>
    %cst_13 = arith.constant 0.353553385 : f32
    %43 = vector.broadcast %cst_13 : f32 to vector<8x8xf32>
    %44 = arith.mulf %42, %43 : vector<8x8xf32>
    %45 = vector.extract_strided_slice %1 {offsets = [0, 48], sizes = [8, 8], strides = [1, 1]} : vector<8x96xf32> to vector<8x8xf32>
    %46 = vector.extract_strided_slice %1 {offsets = [0, 80], sizes = [8, 8], strides = [1, 1]} : vector<8x96xf32> to vector<8x8xf32>
    "tpu.trace_start"() <{level = 10 : i32, message = "qd,kd->qk"}> : () -> ()
    %cst_14 = arith.constant dense<0.000000e+00> : vector<8x8xf32>
    %47 = tpu.matmul %44, %45, %cst_14 {dimension_numbers = #tpu.dot_dimension_numbers<[1], [1], [0], [0], [0, 0, 1, 0], [], []>} : vector<8x8xf32>, vector<8x8xf32>, vector<8x8xf32> -> vector<8x8xf32>
    "tpu.trace_stop"() : () -> ()
    %48 = arith.cmpi sgt, %3, %2 : vector<8x8xi32>
    %cst_15 = arith.constant -1.000000e+30 : f32
    %49 = vector.broadcast %cst_15 : f32 to vector<8x8xf32>
    %50 = arith.select %48, %49, %47 : vector<8x8xi1>, vector<8x8xf32>
    %cst_16 = arith.constant dense<0xFF800000> : vector<8xf32>
    %51 = vector.multi_reduction <maximumf>, %50, %cst_16 [1] : vector<8x8xf32> to vector<8xf32>
    %52 = vector.shape_cast %51 : vector<8xf32> to vector<8x1xf32>
    %53 = vector.broadcast %52 : vector<8x1xf32> to vector<8x8xf32>
    %54 = arith.subf %50, %53 : vector<8x8xf32>
    %55 = math.exp %54 : vector<8x8xf32>
    %cst_17 = arith.constant dense<0.000000e+00> : vector<8xf32>
    %56 = vector.multi_reduction <add>, %55, %cst_17 [1] : vector<8x8xf32> to vector<8xf32>
    %57 = vector.shape_cast %56 : vector<8xf32> to vector<8x1xf32>
    %58 = vector.broadcast %57 : vector<8x1xf32> to vector<8x8xf32>
    %59 = arith.divf %55, %58 : vector<8x8xf32>
    %cst_18 = arith.constant dense<0.000000e+00> : vector<8x8xf32>
    %60 = tpu.matmul %59, %46, %cst_18 {dimension_numbers = #tpu.dot_dimension_numbers<[1], [0], [0], [1], [0, 0, 1, 1], [], []>} : vector<8x8xf32>, vector<8x8xf32>, vector<8x8xf32> -> vector<8x8xf32>
    %61 = vector.extract_strided_slice %1 {offsets = [0, 24], sizes = [8, 8], strides = [1, 1]} : vector<8x96xf32> to vector<8x8xf32>
    %cst_19 = arith.constant 0.353553385 : f32
    %62 = vector.broadcast %cst_19 : f32 to vector<8x8xf32>
    %63 = arith.mulf %61, %62 : vector<8x8xf32>
    %64 = vector.extract_strided_slice %1 {offsets = [0, 56], sizes = [8, 8], strides = [1, 1]} : vector<8x96xf32> to vector<8x8xf32>
    %65 = vector.extract_strided_slice %1 {offsets = [0, 88], sizes = [8, 8], strides = [1, 1]} : vector<8x96xf32> to vector<8x8xf32>
    "tpu.trace_start"() <{level = 10 : i32, message = "qd,kd->qk"}> : () -> ()
    %cst_20 = arith.constant dense<0.000000e+00> : vector<8x8xf32>
    %66 = tpu.matmul %63, %64, %cst_20 {dimension_numbers = #tpu.dot_dimension_numbers<[1], [1], [0], [0], [0, 0, 1, 0], [], []>} : vector<8x8xf32>, vector<8x8xf32>, vector<8x8xf32> -> vector<8x8xf32>
    "tpu.trace_stop"() : () -> ()
    %67 = arith.cmpi sgt, %3, %2 : vector<8x8xi32>
    %cst_21 = arith.constant -1.000000e+30 : f32
    %68 = vector.broadcast %cst_21 : f32 to vector<8x8xf32>
    %69 = arith.select %67, %68, %66 : vector<8x8xi1>, vector<8x8xf32>
    %cst_22 = arith.constant dense<0xFF800000> : vector<8xf32>
    %70 = vector.multi_reduction <maximumf>, %69, %cst_22 [1] : vector<8x8xf32> to vector<8xf32>
    %71 = vector.shape_cast %70 : vector<8xf32> to vector<8x1xf32>
    %72 = vector.broadcast %71 : vector<8x1xf32> to vector<8x8xf32>
    %73 = arith.subf %69, %72 : vector<8x8xf32>
    %74 = math.exp %73 : vector<8x8xf32>
    %cst_23 = arith.constant dense<0.000000e+00> : vector<8xf32>
    %75 = vector.multi_reduction <add>, %74, %cst_23 [1] : vector<8x8xf32> to vector<8xf32>
    %76 = vector.shape_cast %75 : vector<8xf32> to vector<8x1xf32>
    %77 = vector.broadcast %76 : vector<8x1xf32> to vector<8x8xf32>
    %78 = arith.divf %74, %77 : vector<8x8xf32>
    %cst_24 = arith.constant dense<0.000000e+00> : vector<8x8xf32>
    %79 = tpu.matmul %78, %65, %cst_24 {dimension_numbers = #tpu.dot_dimension_numbers<[1], [0], [0], [1], [0, 0, 1, 1], [], []>} : vector<8x8xf32>, vector<8x8xf32>, vector<8x8xf32> -> vector<8x8xf32>
    %80 = tpu.concatenate %22, %41, %60, %79 in 1 : vector<8x8xf32>, vector<8x8xf32>, vector<8x8xf32>, vector<8x8xf32> -> vector<8x32xf32>
    %c0_25 = arith.constant 0 : index
    %c0_26 = arith.constant 0 : index
    %c0_27 = arith.constant 0 : index
    %81 = vector.load %arg2[%c0_25, %c0_26, %c0_27] : memref<1x8x32xf32, #tpu.memory_space<vmem>>, vector<1x8x32xf32>
    %82 = vector.shape_cast %81 : vector<1x8x32xf32> to vector<8x32xf32>
    %83 = vector.shape_cast %80 : vector<8x32xf32> to vector<1x8x32xf32>
    tpu.vector_store %arg2[%c0_25, %c0_26, %c0_27], %83 {strides = array<i32>} : memref<1x8x32xf32, #tpu.memory_space<vmem>>, vector<1x8x32xf32>,
    return
  }
  func.func @transform_0(%arg0: i32) -> (i32, i32, i32) {
    %c0_i32 = arith.constant 0 : i32
    %c0_i32_0 = arith.constant 0 : i32
    %c0_i32_1 = arith.constant 0 : i32
    return %arg0, %c0_i32, %c0_i32_0 : i32, i32, i32
  }
  func.func @transform_1(%arg0: i32) -> (i32, i32, i32) {
    %c0_i32 = arith.constant 0 : i32
    %c0_i32_0 = arith.constant 0 : i32
    %c0_i32_1 = arith.constant 0 : i32
    return %arg0, %c0_i32, %c0_i32_0 : i32, i32, i32
  }
}

module attributes {stable_mosaic.version = 11 : i64} {
  func.func @_matmul_resid_kernel(%arg0: i32, %arg1: i32, %arg2: memref<16x128xf32, #tpu.memory_space<vmem>>, %arg3: memref<128x32xf32, #tpu.memory_space<vmem>>, %arg4: memref<1x32xf32, #tpu.memory_space<vmem>>, %arg5: memref<16x32xf32, #tpu.memory_space<vmem>>, %arg6: memref<16x32xf32, #tpu.memory_space<vmem>>) attributes {dimension_semantics = [#tpu.dimension_semantics<parallel>, #tpu.dimension_semantics<parallel>], iteration_bounds = array<i64: 1, 1>, scalar_prefetch = 0 : i64, scratch_operands = 0 : i64, tpu.core_type = #tpu.core_type<tc>, window_params = [{transform_indices = @transform_0, window_bounds = array<i64: 16, 128>}, {transform_indices = @transform_1, window_bounds = array<i64: 128, 32>}, {transform_indices = @transform_2, window_bounds = array<i64: 1, 32>}, {transform_indices = @transform_3, window_bounds = array<i64: 16, 32>}, {transform_indices = @transform_4, window_bounds = array<i64: 16, 32>}]} {
    %c0 = arith.constant 0 : index
    %c0_0 = arith.constant 0 : index
    %0 = vector.load %arg2[%c0, %c0_0] : memref<16x128xf32, #tpu.memory_space<vmem>>, vector<16x128xf32>
    %c0_1 = arith.constant 0 : index
    %c0_2 = arith.constant 0 : index
    %1 = vector.load %arg3[%c0_1, %c0_2] : memref<128x32xf32, #tpu.memory_space<vmem>>, vector<128x32xf32>
    %cst = arith.constant dense<0.000000e+00> : vector<16x32xf32>
    %2 = tpu.matmul %0, %1, %cst {dimension_numbers = #tpu.dot_dimension_numbers<[1], [0], [0], [1], [0, 0, 1, 1], [], []>} : vector<16x128xf32>, vector<128x32xf32>, vector<16x32xf32> -> vector<16x32xf32>
    %c0_3 = arith.constant 0 : index
    %c0_4 = arith.constant 0 : index
    %3 = vector.load %arg4[%c0_3, %c0_4] : memref<1x32xf32, #tpu.memory_space<vmem>>, vector<1x32xf32>
    %4 = vector.broadcast %3 : vector<1x32xf32> to vector<16x32xf32>
    %5 = arith.addf %2, %4 : vector<16x32xf32>
    %c0_5 = arith.constant 0 : index
    %c0_6 = arith.constant 0 : index
    %6 = vector.load %arg5[%c0_5, %c0_6] : memref<16x32xf32, #tpu.memory_space<vmem>>, vector<16x32xf32>
    %7 = arith.addf %5, %6 : vector<16x32xf32>
    %c0_7 = arith.constant 0 : index
    %c0_8 = arith.constant 0 : index
    %8 = vector.load %arg6[%c0_7, %c0_8] : memref<16x32xf32, #tpu.memory_space<vmem>>, vector<16x32xf32>
    tpu.vector_store %arg6[%c0_7, %c0_8], %7 {strides = array<i32>} : memref<16x32xf32, #tpu.memory_space<vmem>>, vector<16x32xf32>,
    return
  }
  func.func @transform_0(%arg0: i32, %arg1: i32) -> (i32, i32) {
    %c0_i32 = arith.constant 0 : i32
    %c0_i32_0 = arith.constant 0 : i32
    return %arg0, %c0_i32 : i32, i32
  }
  func.func @transform_1(%arg0: i32, %arg1: i32) -> (i32, i32) {
    %c0_i32 = arith.constant 0 : i32
    %c0_i32_0 = arith.constant 0 : i32
    return %c0_i32, %arg1 : i32, i32
  }
  func.func @transform_2(%arg0: i32, %arg1: i32) -> (i32, i32) {
    %c0_i32 = arith.constant 0 : i32
    %c0_i32_0 = arith.constant 0 : i32
    return %c0_i32, %arg1 : i32, i32
  }
  func.func @transform_3(%arg0: i32, %arg1: i32) -> (i32, i32) {
    %c0_i32 = arith.constant 0 : i32
    return %arg0, %arg1 : i32, i32
  }
  func.func @transform_4(%arg0: i32, %arg1: i32) -> (i32, i32) {
    %c0_i32 = arith.constant 0 : i32
    return %arg0, %arg1 : i32, i32
  }
}

module attributes {stable_mosaic.version = 11 : i64} {
  func.func @_ln_matmul_kernel(%arg0: i32, %arg1: i32, %arg2: memref<16x32xf32, #tpu.memory_space<vmem>>, %arg3: memref<1x32xf32, #tpu.memory_space<vmem>>, %arg4: memref<1x32xf32, #tpu.memory_space<vmem>>, %arg5: memref<32x128xf32, #tpu.memory_space<vmem>>, %arg6: memref<1x128xf32, #tpu.memory_space<vmem>>, %arg7: memref<16x128xf32, #tpu.memory_space<vmem>>) attributes {dimension_semantics = [#tpu.dimension_semantics<parallel>, #tpu.dimension_semantics<parallel>], iteration_bounds = array<i64: 1, 1>, scalar_prefetch = 0 : i64, scratch_operands = 0 : i64, tpu.core_type = #tpu.core_type<tc>, window_params = [{transform_indices = @transform_0, window_bounds = array<i64: 16, 32>}, {pipeline_mode = #tpu.pipeline_mode<synchronous>, transform_indices = @transform_1, window_bounds = array<i64: 1, 32>}, {pipeline_mode = #tpu.pipeline_mode<synchronous>, transform_indices = @transform_2, window_bounds = array<i64: 1, 32>}, {transform_indices = @transform_3, window_bounds = array<i64: 32, 128>}, {transform_indices = @transform_4, window_bounds = array<i64: 1, 128>}, {transform_indices = @transform_5, window_bounds = array<i64: 16, 128>}]} {
    %c0 = arith.constant 0 : index
    %c0_0 = arith.constant 0 : index
    %0 = vector.load %arg2[%c0, %c0_0] : memref<16x32xf32, #tpu.memory_space<vmem>>, vector<16x32xf32>
    %cst = arith.constant dense<0.000000e+00> : vector<16xf32>
    %1 = vector.multi_reduction <add>, %0, %cst [1] : vector<16x32xf32> to vector<16xf32>
    %2 = vector.shape_cast %1 : vector<16xf32> to vector<16x1xf32>
    %cst_1 = arith.constant 3.200000e+01 : f32
    %3 = vector.broadcast %cst_1 : f32 to vector<16x1xf32>
    %4 = arith.divf %2, %3 : vector<16x1xf32>
    %5 = vector.broadcast %4 : vector<16x1xf32> to vector<16x32xf32>
    %6 = arith.subf %0, %5 : vector<16x32xf32>
    %7 = arith.mulf %6, %6 : vector<16x32xf32>
    %cst_2 = arith.constant dense<0.000000e+00> : vector<16xf32>
    %8 = vector.multi_reduction <add>, %7, %cst_2 [1] : vector<16x32xf32> to vector<16xf32>
    %9 = vector.shape_cast %8 : vector<16xf32> to vector<16x1xf32>
    %cst_3 = arith.constant 3.200000e+01 : f32
    %10 = vector.broadcast %cst_3 : f32 to vector<16x1xf32>
    %11 = arith.divf %9, %10 : vector<16x1xf32>
    %12 = vector.broadcast %4 : vector<16x1xf32> to vector<16x32xf32>
    %13 = arith.subf %0, %12 : vector<16x32xf32>
    %cst_4 = arith.constant 9.99999974E-6 : f32
    %14 = vector.broadcast %cst_4 : f32 to vector<16x1xf32>
    %15 = arith.addf %11, %14 : vector<16x1xf32>
    %16 = math.sqrt %15 : vector<16x1xf32>
    %17 = vector.broadcast %16 : vector<16x1xf32> to vector<16x32xf32>
    %18 = arith.divf %13, %17 : vector<16x32xf32>
    %c0_5 = arith.constant 0 : index
    %c0_6 = arith.constant 0 : index
    %19 = vector.load %arg3[%c0_5, %c0_6] : memref<1x32xf32, #tpu.memory_space<vmem>>, vector<1x32xf32>
    %20 = vector.broadcast %19 : vector<1x32xf32> to vector<16x32xf32>
    %21 = arith.mulf %18, %20 : vector<16x32xf32>
    %c0_7 = arith.constant 0 : index
    %c0_8 = arith.constant 0 : index
    %22 = vector.load %arg4[%c0_7, %c0_8] : memref<1x32xf32, #tpu.memory_space<vmem>>, vector<1x32xf32>
    %23 = vector.broadcast %22 : vector<1x32xf32> to vector<16x32xf32>
    %24 = arith.addf %21, %23 : vector<16x32xf32>
    %c0_9 = arith.constant 0 : index
    %c0_10 = arith.constant 0 : index
    %25 = vector.load %arg5[%c0_9, %c0_10] : memref<32x128xf32, #tpu.memory_space<vmem>>, vector<32x128xf32>
    %cst_11 = arith.constant dense<0.000000e+00> : vector<16x128xf32>
    %26 = tpu.matmul %24, %25, %cst_11 {dimension_numbers = #tpu.dot_dimension_numbers<[1], [0], [0], [1], [0, 0, 1, 1], [], []>} : vector<16x32xf32>, vector<32x128xf32>, vector<16x128xf32> -> vector<16x128xf32>
    %c0_12 = arith.constant 0 : index
    %c0_13 = arith.constant 0 : index
    %27 = vector.load %arg6[%c0_12, %c0_13] : memref<1x128xf32, #tpu.memory_space<vmem>>, vector<1x128xf32>
    %28 = vector.broadcast %27 : vector<1x128xf32> to vector<16x128xf32>
    %29 = arith.addf %26, %28 : vector<16x128xf32>
    %c0_14 = arith.constant 0 : index
    %c0_15 = arith.constant 0 : index
    %30 = vector.load %arg7[%c0_14, %c0_15] : memref<16x128xf32, #tpu.memory_space<vmem>>, vector<16x128xf32>
    tpu.vector_store %arg7[%c0_14, %c0_15], %29 {strides = array<i32>} : memref<16x128xf32, #tpu.memory_space<vmem>>, vector<16x128xf32>,
    return
  }
  func.func @transform_0(%arg0: i32, %arg1: i32) -> (i32, i32) {
    %c0_i32 = arith.constant 0 : i32
    %c0_i32_0 = arith.constant 0 : i32
    return %arg0, %c0_i32 : i32, i32
  }
  func.func @transform_1(%arg0: i32, %arg1: i32) -> (i32, i32) {
    %c0_i32 = arith.constant 0 : i32
    %c0_i32_0 = arith.constant 0 : i32
    %c0_i32_1 = arith.constant 0 : i32
    return %c0_i32, %c0_i32_0 : i32, i32
  }
  func.func @transform_2(%arg0: i32, %arg1: i32) -> (i32, i32) {
    %c0_i32 = arith.constant 0 : i32
    %c0_i32_0 = arith.constant 0 : i32
    %c0_i32_1 = arith.constant 0 : i32
    return %c0_i32, %c0_i32_0 : i32, i32
  }
  func.func @transform_3(%arg0: i32, %arg1: i32) -> (i32, i32) {
    %c0_i32 = arith.constant 0 : i32
    %c0_i32_0 = arith.constant 0 : i32
    return %c0_i32, %arg1 : i32, i32
  }
  func.func @transform_4(%arg0: i32, %arg1: i32) -> (i32, i32) {
    %c0_i32 = arith.constant 0 : i32
    %c0_i32_0 = arith.constant 0 : i32
    return %c0_i32, %arg1 : i32, i32
  }
  func.func @transform_5(%arg0: i32, %arg1: i32) -> (i32, i32) {
    %c0_i32 = arith.constant 0 : i32
    return %arg0, %arg1 : i32, i32
  }
}

</mosaic_0001>

<llo_original>
// kernel: gpt2_forward.11
$region0: #{gpt2_forward.11}
  #allocation0 [shape = 'u32[]', space=smem, size = 0x4, offset = 0x4, fixed_abs, tag = 'smem constant byte address 0x4 - core index']
  #allocation1 [shape = 'u32[144,128]{1,0:T(1,128)}', space=vmem, size = 0x12000, scoped, tag = 'internal scratch']
  %s0 = inlined_call_operand.vmem [shape: f32[16,32], index: 0, kind: input, shape index: {}]
  %s1 = inlined_call_operand.vmem [shape: f32[1,32], index: 1, kind: input, shape index: {}]
  %s2 = inlined_call_operand.vmem [shape: f32[1,32], index: 2, kind: input, shape index: {}]
  %s3 = inlined_call_operand.vmem [shape: f32[32,96], index: 3, kind: input, shape index: {}]
  %s4 = inlined_call_operand.vmem [shape: f32[1,96], index: 4, kind: input, shape index: {}]
  %s5 = inlined_call_operand.vmem [shape: f32[16,96], index: 5, kind: output, shape index: {}]
  %s6 = sld [smem:[#allocation0]]
  $region30: #{gpt2_forward.11} parent=0
    _
  %s8 = ssub.s32 1, %s6
  %s9 = scalar_select 0, %s8, %s6
  // Predicated region
  $region2: #{gpt2_forward.11} parent=0 // pred_check
    _
  $region3: #{gpt2_forward.11} parent=0 // pred_check_branch
    %11 = sbr.rel (0) target = $region5
  $region4: #{gpt2_forward.11} parent=0 // pred_region
    _
  $region5: #{gpt2_forward.11} parent=0 // pred_fallthru
    _
  // Predicated region
  $region6: #{gpt2_forward.11} parent=0 // pred_check
    _
  $region7: #{gpt2_forward.11} parent=0 // pred_check_branch
    %13 = sbr.rel (0) target = $region9
  $region8: #{gpt2_forward.11} parent=0 // pred_region
    _
  $region9: #{gpt2_forward.11} parent=0 // pred_fallthru
    _
  // Predicated region
  $region10: #{gpt2_forward.11} parent=0 // pred_check
    _
  $region11: #{gpt2_forward.11} parent=0 // pred_check_branch
    %15 = sbr.rel (0) target = $region13
  $region12: #{gpt2_forward.11} parent=0 // pred_region
    _
  $region13: #{gpt2_forward.11} parent=0 // pred_fallthru
    _
  // Predicated region
  $region14: #{gpt2_forward.11} parent=0 // pred_check
    _
  $region15: #{gpt2_forward.11} parent=0 // pred_check_branch
    %17 = sbr.rel (0) target = $region17
  $region16: #{gpt2_forward.11} parent=0 // pred_region
    _
  $region17: #{gpt2_forward.11} parent=0 // pred_fallthru
    _
  // Predicated region
  $region18: #{gpt2_forward.11} parent=0 // pred_check
    _
  $region19: #{gpt2_forward.11} parent=0 // pred_check_branch
    %19 = sbr.rel (0) target = $region21
  $region20: #{gpt2_forward.11} parent=0 // pred_region
    _
  $region21: #{gpt2_forward.11} parent=0 // pred_fallthru
    _
  %v20 = vld [vmem:[%s0] sm:$0xff]
  %v21 = vld [vmem:[%s0 + $0x8] sm:$0xff]
  %vm22 = vcmask 261120
  %v23 = vsel %vm22, %v20, 0.0
  %24 = vadd.xlane.f32.xlu0 %v23
  %v25 = vpop.xlane.xlu0 %24
  %v26 = vsel %vm22, %v21, 0.0
  %27 = vadd.xlane.f32.xlu0 %v26
  %v28 = vpop.xlane.xlu0 %27
  %v29 = vrcp.pop 32.0
  %v30 = vmul.f32 %v25, %v29
  %v31 = vmul.f32 %v28, %v29
  %v32 = vsub.f32 %v20, %v30
  %v33 = vsub.f32 %v21, %v31
  %v34 = vmul.f32 %v32, %v32
  %v35 = vmul.f32 %v33, %v33
  %v36 = vsel %vm22, %v34, 0.0
  %37 = vadd.xlane.f32.xlu0 %v36
  %v38 = vpop.xlane.xlu0 %37
  %v39 = vsel %vm22, %v35, 0.0
  %40 = vadd.xlane.f32.xlu0 %v39
  %v41 = vpop.xlane.xlu0 %40
  %v42 = vmul.f32 %v38, %v29
  %v43 = vmul.f32 %v41, %v29
  %v44 = vadd.f32 %v42, 1e-05
  %v45 = vadd.f32 %v43, 1e-05
  %v46 = vrsqrt.pop %v44
  %v47 = vmul.f32 %v44, %v46
  %vm48 = vcmp.eq.f32.partialorder %v44, inf
  %v49 = vsel %vm48, %v44, %v47
  %vm50 = vcmp.eq.f32.partialorder %v44, 0.0
  %v51 = vand.u32 %v44, 2147483648
  %v52 = vsel %vm50, %v51, %v49
  %v53 = vrsqrt.pop %v45
  %v54 = vmul.f32 %v45, %v53
  %vm55 = vcmp.eq.f32.partialorder %v45, inf
  %v56 = vsel %vm55, %v45, %v54
  %vm57 = vcmp.eq.f32.partialorder %v45, 0.0
  %v58 = vand.u32 %v45, 2147483648
  %v59 = vsel %vm57, %v58, %v56
  %v60 = vrcp.pop %v52
  %v61 = vmul.f32 %v32, %v60
  %v62 = vrcp.pop %v59
  %v63 = vmul.f32 %v33, %v62
  %v64 = vld [vmem:[%s1] sm:$0x1]
  %v66 = vlaneseq
  %v67 = vshrl.u32 %v66, 7
  %v68 = vsub.s32 0, %v67
  %v69 = vrot.slane %v64, %v68
  %v71 = vmul.f32 %v61, %v69
  %v72 = vmul.f32 %v63, %v69
  %v73 = vld [vmem:[%s2] sm:$0x1]
  %v75 = vlaneseq
  %v76 = vshrl.u32 %v75, 7
  %v77 = vsub.s32 0, %v76
  %v78 = vrot.slane %v73, %v77
  %v80 = vadd.f32 %v71, %v78
  %v81 = vadd.f32 %v72, %v78
  %v82 = vld [vmem:[%s3] sm:$0xff]
  %v83 = vld [vmem:[%s3 + $0x8] sm:$0xff]
  %v84 = vld [vmem:[%s3 + $0x10] sm:$0xff]
  %v85 = vld [vmem:[%s3 + $0x18] sm:$0xff]
  %v86 = vld [vmem:[%s4] sm:$0x1]
  %v88 = vlaneseq
  %v89 = vshrl.u32 %v88, 7
  %v90 = vsub.s32 0, %v89
  %v91 = vrot.slane %v86, %v90
  %v94 = vsel %vm22, %v80, 0
  %v97 = vsel %vm22, %v81, 0
  %99 = vmatprep.subr.mxu0 0.0
  %100 = vmatpush1.msra.mxu0 0.0
  %101 = vmatprep.subr.mxu0 0.0
  %102 = vmatpush1.msra.mxu0 0.0
  %103 = vmatprep.subr.mxu0 0.0
  %104 = vmatpush1.msra.mxu0 0.0
  %105 = vmatprep.subr.mxu0 0.0
  %106 = vmatpush1.msra.mxu0 0.0
  %107 = vmatprep.subr.mxu0 0.0
  %108 = vmatpush1.msra.mxu0 0.0
  %109 = vmatprep.subr.mxu0 0.0
  %110 = vmatpush1.msra.mxu0 0.0
  %111 = vmatprep.subr.mxu0 0.0
  %112 = vmatpush1.msra.mxu0 0.0
  %113 = vmatprep.subr.mxu0 0.0
  %114 = vmatpush1.msra.mxu0 0.0
  %115 = vmatprep.subr.mxu0 0.0
  %116 = vmatpush1.msra.mxu0 0.0
  %117 = vmatprep.subr.mxu0 0.0
  %118 = vmatpush1.msra.mxu0 0.0
  %119 = vmatprep.subr.mxu0 0.0
  %120 = vmatpush1.msra.mxu0 0.0
  %121 = vmatprep.subr.mxu0 0.0
  %122 = vmatpush1.msra.mxu0 0.0
  %123 = vmatprep.subr.mxu0 0.0
  %124 = vmatpush1.msra.mxu0 %v85
  %125 = vmatprep.subr.mxu0 0.0
  %126 = vmatpush1.msra.mxu0 %v84
  %127 = vmatprep.subr.mxu0 0.0
  %128 = vmatpush1.msra.mxu0 %v83
  %129 = vmatprep.subr.mxu0 0.0
  %130 = vmatpush1.msra.mxu0 %v82
  %131 = vmatprep.subr.mxu0 0.0
  %132 = vmatpush2.msra.mxu0 0.0
  %133 = vmatprep.subr.mxu0 0.0
  %134 = vmatpush2.msra.mxu0 0.0
  %135 = vmatprep.subr.mxu0 0.0
  %136 = vmatpush2.msra.mxu0 0.0
  %137 = vmatprep.subr.mxu0 0.0
  %138 = vmatpush2.msra.mxu0 0.0
  %139 = vmatprep.subr.mxu0 0.0
  %140 = vmatpush2.msra.mxu0 0.0
  %141 = vmatprep.subr.mxu0 0.0
  %142 = vmatpush2.msra.mxu0 0.0
  %143 = vmatprep.subr.mxu0 0.0
  %144 = vmatpush2.msra.mxu0 0.0
  %145 = vmatprep.subr.mxu0 0.0
  %146 = vmatpush2.msra.mxu0 0.0
  %147 = vmatprep.subr.mxu0 0.0
  %148 = vmatpush2.msra.mxu0 0.0
  %149 = vmatprep.subr.mxu0 0.0
  %150 = vmatpush2.msra.mxu0 0.0
  %151 = vmatprep.subr.mxu0 0.0
  %152 = vmatpush2.msra.mxu0 0.0
  %153 = vmatprep.subr.mxu0 0.0
  %154 = vmatpush2.msra.mxu0 0.0
  %155 = vmatprep.subr.mxu0 0.0
  %156 = vmatpush2.msra.mxu0 0.0
  %157 = vmatprep.subr.mxu0 0.0
  %158 = vmatpush2.msra.mxu0 0.0
  %159 = vmatprep.subr.mxu0 0.0
  %160 = vmatpush2.msra.mxu0 0.0
  %161 = vmatprep.subr.mxu0 0.0
  %162 = vmatpush2.msra.mxu0 0.0
  %163 = vmatprep.mubr.f32.mxu0 0.0
  %164 = vmatmul.mubr.f32.gmra.mxu0 %v94
  %v165 = vpop.f32.mrf.mxu0
  %v166 = vadd.f32 %v91, %v165
  %v167 = vpop.f32.mrf.mxu0
  %168 = vmatprep.mubr.f32.mxu0 0.0
  %169 = vmatmul.mubr.f32.gmra.mxu0 %v97
  %v170 = vpop.f32.mrf.mxu0
  %v171 = vadd.f32 %v91, %v170
  %v172 = vpop.f32.mrf.mxu0
  %173 = vdwg.mxu0
  %vm174 = vcmask 785408
  %175 = vst.msk [vmem:[%s5] sm:$0xff] %vm174, %v166
  %176 = vst.msk [vmem:[%s5 + $0x8] sm:$0xff] %vm174, %v171
  // Predicated region
  $region22: #{gpt2_forward.11} parent=0 // pred_check
    _
  $region23: #{gpt2_forward.11} parent=0 // pred_check_branch
    %178 = sbr.rel (0) target = $region25
  $region24: #{gpt2_forward.11} parent=0 // pred_region
    _
  $region25: #{gpt2_forward.11} parent=0 // pred_fallthru
    _
  // Predicated region
  $region26: #{gpt2_forward.11} parent=0 // pred_check
    _
  $region27: #{gpt2_forward.11} parent=0 // pred_check_branch
    %180 = sbr.rel (0) target = $region29
  $region28: #{gpt2_forward.11} parent=0 // pred_region
    _
  $region29: #{gpt2_forward.11} parent=0 // pred_fallthru
    _

// kernel: gpt2_forward.13
$region0: #{gpt2_forward.13}
  #allocation0 [shape = 'u32[]', space=smem, size = 0x4, offset = 0x4, fixed_abs, tag = 'smem constant byte address 0x4 - core index']
  #allocation1 [shape = 'u32[144,128]{1,0:T(1,128)}', space=vmem, size = 0x12000, scoped, tag = 'internal scratch']
  %s0 = inlined_call_operand.vmem [shape: f32[16,32], index: 0, kind: input, shape index: {}]
  %s1 = inlined_call_operand.vmem [shape: f32[32,32], index: 1, kind: input, shape index: {}]
  %s2 = inlined_call_operand.vmem [shape: f32[1,32], index: 2, kind: input, shape index: {}]
  %s3 = inlined_call_operand.vmem [shape: f32[16,32], index: 3, kind: input, shape index: {}]
  %s4 = inlined_call_operand.vmem [shape: f32[16,32], index: 4, kind: output, shape index: {}]
  %s5 = sld [smem:[#allocation0]]
  $region26: #{gpt2_forward.13} parent=0
    _
  %s7 = ssub.s32 1, %s5
  %s8 = scalar_select 0, %s7, %s5
  // Predicated region
  $region2: #{gpt2_forward.13} parent=0 // pred_check
    _
  $region3: #{gpt2_forward.13} parent=0 // pred_check_branch
    %10 = sbr.rel (0) target = $region5
  $region4: #{gpt2_forward.13} parent=0 // pred_region
    _
  $region5: #{gpt2_forward.13} parent=0 // pred_fallthru
    _
  // Predicated region
  $region6: #{gpt2_forward.13} parent=0 // pred_check
    _
  $region7: #{gpt2_forward.13} parent=0 // pred_check_branch
    %12 = sbr.rel (0) target = $region9
  $region8: #{gpt2_forward.13} parent=0 // pred_region
    _
  $region9: #{gpt2_forward.13} parent=0 // pred_fallthru
    _
  // Predicated region
  $region10: #{gpt2_forward.13} parent=0 // pred_check
    _
  $region11: #{gpt2_forward.13} parent=0 // pred_check_branch
    %14 = sbr.rel (0) target = $region13
  $region12: #{gpt2_forward.13} parent=0 // pred_region
    _
  $region13: #{gpt2_forward.13} parent=0 // pred_fallthru
    _
  // Predicated region
  $region14: #{gpt2_forward.13} parent=0 // pred_check
    _
  $region15: #{gpt2_forward.13} parent=0 // pred_check_branch
    %16 = sbr.rel (0) target = $region17
  $region16: #{gpt2_forward.13} parent=0 // pred_region
    _
  $region17: #{gpt2_forward.13} parent=0 // pred_fallthru
    _
  %v17 = vld [vmem:[%s0] sm:$0xff]
  %v18 = vld [vmem:[%s0 + $0x8] sm:$0xff]
  %v19 = vld [vmem:[%s1] sm:$0xff]
  %v20 = vld [vmem:[%s1 + $0x8] sm:$0xff]
  %v21 = vld [vmem:[%s1 + $0x10] sm:$0xff]
  %v22 = vld [vmem:[%s1 + $0x18] sm:$0xff]
  %v23 = vld [vmem:[%s2] sm:$0x1]
  %v25 = vlaneseq
  %v26 = vshrl.u32 %v25, 7
  %v27 = vsub.s32 0, %v26
  %v28 = vrot.slane %v23, %v27
  %vm30 = vcmask 261120
  %v32 = vsel %vm30, %v17, 0
  %v35 = vsel %vm30, %v18, 0
  %37 = vmatprep.subr.mxu0 0.0
  %38 = vmatpush1.msra.mxu0 0.0
  %39 = vmatprep.subr.mxu0 0.0
  %40 = vmatpush1.msra.mxu0 0.0
  %41 = vmatprep.subr.mxu0 0.0
  %42 = vmatpush1.msra.mxu0 0.0
  %43 = vmatprep.subr.mxu0 0.0
  %44 = vmatpush1.msra.mxu0 0.0
  %45 = vmatprep.subr.mxu0 0.0
  %46 = vmatpush1.msra.mxu0 0.0
  %47 = vmatprep.subr.mxu0 0.0
  %48 = vmatpush1.msra.mxu0 0.0
  %49 = vmatprep.subr.mxu0 0.0
  %50 = vmatpush1.msra.mxu0 0.0
  %51 = vmatprep.subr.mxu0 0.0
  %52 = vmatpush1.msra.mxu0 0.0
  %53 = vmatprep.subr.mxu0 0.0
  %54 = vmatpush1.msra.mxu0 0.0
  %55 = vmatprep.subr.mxu0 0.0
  %56 = vmatpush1.msra.mxu0 0.0
  %57 = vmatprep.subr.mxu0 0.0
  %58 = vmatpush1.msra.mxu0 0.0
  %59 = vmatprep.subr.mxu0 0.0
  %60 = vmatpush1.msra.mxu0 0.0
  %61 = vmatprep.subr.mxu0 0.0
  %62 = vmatpush1.msra.mxu0 %v22
  %63 = vmatprep.subr.mxu0 0.0
  %64 = vmatpush1.msra.mxu0 %v21
  %65 = vmatprep.subr.mxu0 0.0
  %66 = vmatpush1.msra.mxu0 %v20
  %67 = vmatprep.subr.mxu0 0.0
  %68 = vmatpush1.msra.mxu0 %v19
  %69 = vmatprep.subr.mxu0 0.0
  %70 = vmatpush2.msra.mxu0 0.0
  %71 = vmatprep.subr.mxu0 0.0
  %72 = vmatpush2.msra.mxu0 0.0
  %73 = vmatprep.subr.mxu0 0.0
  %74 = vmatpush2.msra.mxu0 0.0
  %75 = vmatprep.subr.mxu0 0.0
  %76 = vmatpush2.msra.mxu0 0.0
  %77 = vmatprep.subr.mxu0 0.0
  %78 = vmatpush2.msra.mxu0 0.0
  %79 = vmatprep.subr.mxu0 0.0
  %80 = vmatpush2.msra.mxu0 0.0
  %81 = vmatprep.subr.mxu0 0.0
  %82 = vmatpush2.msra.mxu0 0.0
  %83 = vmatprep.subr.mxu0 0.0
  %84 = vmatpush2.msra.mxu0 0.0
  %85 = vmatprep.subr.mxu0 0.0
  %86 = vmatpush2.msra.mxu0 0.0
  %87 = vmatprep.subr.mxu0 0.0
  %88 = vmatpush2.msra.mxu0 0.0
  %89 = vmatprep.subr.mxu0 0.0
  %90 = vmatpush2.msra.mxu0 0.0
  %91 = vmatprep.subr.mxu0 0.0
  %92 = vmatpush2.msra.mxu0 0.0
  %93 = vmatprep.subr.mxu0 0.0
  %94 = vmatpush2.msra.mxu0 0.0
  %95 = vmatprep.subr.mxu0 0.0
  %96 = vmatpush2.msra.mxu0 0.0
  %97 = vmatprep.subr.mxu0 0.0
  %98 = vmatpush2.msra.mxu0 0.0
  %99 = vmatprep.subr.mxu0 0.0
  %100 = vmatpush2.msra.mxu0 0.0
  %101 = vmatprep.mubr.f32.mxu0 0.0
  %102 = vmatmul.mubr.f32.gmra.mxu0 %v32
  %v103 = vpop.f32.mrf.mxu0
  %v104 = vadd.f32 %v28, %v103
  %v105 = vpop.f32.mrf.mxu0
  %106 = vmatprep.mubr.f32.mxu0 0.0
  %107 = vmatmul.mubr.f32.gmra.mxu0 %v35
  %v108 = vpop.f32.mrf.mxu0
  %v109 = vadd.f32 %v28, %v108
  %v110 = vpop.f32.mrf.mxu0
  %111 = vdwg.mxu0
  %v112 = vld [vmem:[%s3] sm:$0xff]
  %v113 = vld [vmem:[%s3 + $0x8] sm:$0xff]
  %v114 = vadd.f32 %v104, %v112
  %v115 = vadd.f32 %v109, %v113
  %116 = vst.msk [vmem:[%s4] sm:$0xff] %vm30, %v114
  %117 = vst.msk [vmem:[%s4 + $0x8] sm:$0xff] %vm30, %v115
  // Predicated region
  $region18: #{gpt2_forward.13} parent=0 // pred_check
    _
  $region19: #{gpt2_forward.13} parent=0 // pred_check_branch
    %119 = sbr.rel (0) target = $region21
  $region20: #{gpt2_forward.13} parent=0 // pred_region
    _
  $region21: #{gpt2_forward.13} parent=0 // pred_fallthru
    _
  // Predicated region
  $region22: #{gpt2_forward.13} parent=0 // pred_check
    _
  $region23: #{gpt2_forward.13} parent=0 // pred_check_branch
    %121 = sbr.rel (0) target = $region25
  $region24: #{gpt2_forward.13} parent=0 // pred_region
    _
  $region25: #{gpt2_forward.13} parent=0 // pred_fallthru
    _

// kernel: gpt2_forward.14
$region0: #{gpt2_forward.14}
  #allocation0 [shape = 'u32[]', space=smem, size = 0x4, offset = 0x4, fixed_abs, tag = 'smem constant byte address 0x4 - core index']
  #allocation1 [shape = 'u32[144,128]{1,0:T(1,128)}', space=vmem, size = 0x12000, scoped, tag = 'internal scratch']
  %s0 = inlined_call_operand.vmem [shape: f32[16,32], index: 0, kind: input, shape index: {}]
  %s1 = inlined_call_operand.vmem [shape: f32[1,32], index: 1, kind: input, shape index: {}]
  %s2 = inlined_call_operand.vmem [shape: f32[1,32], index: 2, kind: input, shape index: {}]
  %s3 = inlined_call_operand.vmem [shape: f32[32,128], index: 3, kind: input, shape index: {}]
  %s4 = inlined_call_operand.vmem [shape: f32[1,128], index: 4, kind: input, shape index: {}]
  %s5 = inlined_call_operand.vmem [shape: f32[16,128], index: 5, kind: output, shape index: {}]
  %s6 = sld [smem:[#allocation0]]
  $region30: #{gpt2_forward.14} parent=0
    _
  %s8 = ssub.s32 1, %s6
  %s9 = scalar_select 0, %s8, %s6
  // Predicated region
  $region2: #{gpt2_forward.14} parent=0 // pred_check
    _
  $region3: #{gpt2_forward.14} parent=0 // pred_check_branch
    %11 = sbr.rel (0) target = $region5
  $region4: #{gpt2_forward.14} parent=0 // pred_region
    _
  $region5: #{gpt2_forward.14} parent=0 // pred_fallthru
    _
  // Predicated region
  $region6: #{gpt2_forward.14} parent=0 // pred_check
    _
  $region7: #{gpt2_forward.14} parent=0 // pred_check_branch
    %13 = sbr.rel (0) target = $region9
  $region8: #{gpt2_forward.14} parent=0 // pred_region
    _
  $region9: #{gpt2_forward.14} parent=0 // pred_fallthru
    _
  // Predicated region
  $region10: #{gpt2_forward.14} parent=0 // pred_check
    _
  $region11: #{gpt2_forward.14} parent=0 // pred_check_branch
    %15 = sbr.rel (0) target = $region13
  $region12: #{gpt2_forward.14} parent=0 // pred_region
    _
  $region13: #{gpt2_forward.14} parent=0 // pred_fallthru
    _
  // Predicated region
  $region14: #{gpt2_forward.14} parent=0 // pred_check
    _
  $region15: #{gpt2_forward.14} parent=0 // pred_check_branch
    %17 = sbr.rel (0) target = $region17
  $region16: #{gpt2_forward.14} parent=0 // pred_region
    _
  $region17: #{gpt2_forward.14} parent=0 // pred_fallthru
    _
  // Predicated region
  $region18: #{gpt2_forward.14} parent=0 // pred_check
    _
  $region19: #{gpt2_forward.14} parent=0 // pred_check_branch
    %19 = sbr.rel (0) target = $region21
  $region20: #{gpt2_forward.14} parent=0 // pred_region
    _
  $region21: #{gpt2_forward.14} parent=0 // pred_fallthru
    _
  %v20 = vld [vmem:[%s0] sm:$0xff]
  %v21 = vld [vmem:[%s0 + $0x8] sm:$0xff]
  %vm22 = vcmask 261120
  %v23 = vsel %vm22, %v20, 0.0
  %24 = vadd.xlane.f32.xlu0 %v23
  %v25 = vpop.xlane.xlu0 %24
  %v26 = vsel %vm22, %v21, 0.0
  %27 = vadd.xlane.f32.xlu0 %v26
  %v28 = vpop.xlane.xlu0 %27
  %v29 = vrcp.pop 32.0
  %v30 = vmul.f32 %v25, %v29
  %v31 = vmul.f32 %v28, %v29
  %v32 = vsub.f32 %v20, %v30
  %v33 = vsub.f32 %v21, %v31
  %v34 = vmul.f32 %v32, %v32
  %v35 = vmul.f32 %v33, %v33
  %v36 = vsel %vm22, %v34, 0.0
  %37 = vadd.xlane.f32.xlu0 %v36
  %v38 = vpop.xlane.xlu0 %37
  %v39 = vsel %vm22, %v35, 0.0
  %40 = vadd.xlane.f32.xlu0 %v39
  %v41 = vpop.xlane.xlu0 %40
  %v42 = vmul.f32 %v38, %v29
  %v43 = vmul.f32 %v41, %v29
  %v44 = vadd.f32 %v42, 1e-05
  %v45 = vadd.f32 %v43, 1e-05
  %v46 = vrsqrt.pop %v44
  %v47 = vmul.f32 %v44, %v46
  %vm48 = vcmp.eq.f32.partialorder %v44, inf
  %v49 = vsel %vm48, %v44, %v47
  %vm50 = vcmp.eq.f32.partialorder %v44, 0.0
  %v51 = vand.u32 %v44, 2147483648
  %v52 = vsel %vm50, %v51, %v49
  %v53 = vrsqrt.pop %v45
  %v54 = vmul.f32 %v45, %v53
  %vm55 = vcmp.eq.f32.partialorder %v45, inf
  %v56 = vsel %vm55, %v45, %v54
  %vm57 = vcmp.eq.f32.partialorder %v45, 0.0
  %v58 = vand.u32 %v45, 2147483648
  %v59 = vsel %vm57, %v58, %v56
  %v60 = vrcp.pop %v52
  %v61 = vmul.f32 %v32, %v60
  %v62 = vrcp.pop %v59
  %v63 = vmul.f32 %v33, %v62
  %v64 = vld [vmem:[%s1] sm:$0x1]
  %v66 = vlaneseq
  %v67 = vshrl.u32 %v66, 7
  %v68 = vsub.s32 0, %v67
  %v69 = vrot.slane %v64, %v68
  %v71 = vmul.f32 %v61, %v69
  %v72 = vmul.f32 %v63, %v69
  %v73 = vld [vmem:[%s2] sm:$0x1]
  %v75 = vlaneseq
  %v76 = vshrl.u32 %v75, 7
  %v77 = vsub.s32 0, %v76
  %v78 = vrot.slane %v73, %v77
  %v80 = vadd.f32 %v71, %v78
  %v81 = vadd.f32 %v72, %v78
  %v82 = vld [vmem:[%s3] sm:$0xff]
  %v83 = vld [vmem:[%s3 + $0x8] sm:$0xff]
  %v84 = vld [vmem:[%s3 + $0x10] sm:$0xff]
  %v85 = vld [vmem:[%s3 + $0x18] sm:$0xff]
  %v86 = vld [vmem:[%s4] sm:$0x1]
  %v88 = vlaneseq
  %v89 = vshrl.u32 %v88, 7
  %v90 = vsub.s32 0, %v89
  %v91 = vrot.slane %v86, %v90
  %v94 = vsel %vm22, %v80, 0
  %v97 = vsel %vm22, %v81, 0
  %99 = vmatprep.subr.mxu0 0.0
  %100 = vmatpush1.msra.mxu0 0.0
  %101 = vmatprep.subr.mxu0 0.0
  %102 = vmatpush1.msra.mxu0 0.0
  %103 = vmatprep.subr.mxu0 0.0
  %104 = vmatpush1.msra.mxu0 0.0
  %105 = vmatprep.subr.mxu0 0.0
  %106 = vmatpush1.msra.mxu0 0.0
  %107 = vmatprep.subr.mxu0 0.0
  %108 = vmatpush1.msra.mxu0 0.0
  %109 = vmatprep.subr.mxu0 0.0
  %110 = vmatpush1.msra.mxu0 0.0
  %111 = vmatprep.subr.mxu0 0.0
  %112 = vmatpush1.msra.mxu0 0.0
  %113 = vmatprep.subr.mxu0 0.0
  %114 = vmatpush1.msra.mxu0 0.0
  %115 = vmatprep.subr.mxu0 0.0
  %116 = vmatpush1.msra.mxu0 0.0
  %117 = vmatprep.subr.mxu0 0.0
  %118 = vmatpush1.msra.mxu0 0.0
  %119 = vmatprep.subr.mxu0 0.0
  %120 = vmatpush1.msra.mxu0 0.0
  %121 = vmatprep.subr.mxu0 0.0
  %122 = vmatpush1.msra.mxu0 0.0
  %123 = vmatprep.subr.mxu0 0.0
  %124 = vmatpush1.msra.mxu0 %v85
  %125 = vmatprep.subr.mxu0 0.0
  %126 = vmatpush1.msra.mxu0 %v84
  %127 = vmatprep.subr.mxu0 0.0
  %128 = vmatpush1.msra.mxu0 %v83
  %129 = vmatprep.subr.mxu0 0.0
  %130 = vmatpush1.msra.mxu0 %v82
  %131 = vmatprep.subr.mxu0 0.0
  %132 = vmatpush2.msra.mxu0 0.0
  %133 = vmatprep.subr.mxu0 0.0
  %134 = vmatpush2.msra.mxu0 0.0
  %135 = vmatprep.subr.mxu0 0.0
  %136 = vmatpush2.msra.mxu0 0.0
  %137 = vmatprep.subr.mxu0 0.0
  %138 = vmatpush2.msra.mxu0 0.0
  %139 = vmatprep.subr.mxu0 0.0
  %140 = vmatpush2.msra.mxu0 0.0
  %141 = vmatprep.subr.mxu0 0.0
  %142 = vmatpush2.msra.mxu0 0.0
  %143 = vmatprep.subr.mxu0 0.0
  %144 = vmatpush2.msra.mxu0 0.0
  %145 = vmatprep.subr.mxu0 0.0
  %146 = vmatpush2.msra.mxu0 0.0
  %147 = vmatprep.subr.mxu0 0.0
  %148 = vmatpush2.msra.mxu0 0.0
  %149 = vmatprep.subr.mxu0 0.0
  %150 = vmatpush2.msra.mxu0 0.0
  %151 = vmatprep.subr.mxu0 0.0
  %152 = vmatpush2.msra.mxu0 0.0
  %153 = vmatprep.subr.mxu0 0.0
  %154 = vmatpush2.msra.mxu0 0.0
  %155 = vmatprep.subr.mxu0 0.0
  %156 = vmatpush2.msra.mxu0 0.0
  %157 = vmatprep.subr.mxu0 0.0
  %158 = vmatpush2.msra.mxu0 0.0
  %159 = vmatprep.subr.mxu0 0.0
  %160 = vmatpush2.msra.mxu0 0.0
  %161 = vmatprep.subr.mxu0 0.0
  %162 = vmatpush2.msra.mxu0 0.0
  %163 = vmatprep.mubr.f32.mxu0 0.0
  %164 = vmatmul.mubr.f32.gmra.mxu0 %v94
  %v165 = vpop.f32.mrf.mxu0
  %v166 = vadd.f32 %v91, %v165
  %v167 = vpop.f32.mrf.mxu0
  %168 = vmatprep.mubr.f32.mxu0 0.0
  %169 = vmatmul.mubr.f32.gmra.mxu0 %v97
  %v170 = vpop.f32.mrf.mxu0
  %v171 = vadd.f32 %v91, %v170
  %v172 = vpop.f32.mrf.mxu0
  %173 = vdwg.mxu0
  %v174 = vmul.f32 %v166, 0.5
  %v175 = vmul.f32 %v171, 0.5
  %v176 = vmul.f32 %v166, %v166
  %v177 = vmul.f32 %v171, %v171
  %v178 = vmul.f32 %v166, %v176
  %v179 = vmul.f32 %v171, %v177
  %v180 = vmul.f32 %v178, 0.044715
  %v181 = vmul.f32 %v179, 0.044715
  %v182 = vadd.f32 %v166, %v180
  %v183 = vadd.f32 %v171, %v181
  %v184 = vmul.f32 %v182, 0.7978846
  %v185 = vmul.f32 %v183, 0.7978846
  %v186 = vtanh.pop %v184
  %v187 = vtanh.pop %v185
  %v188 = vadd.f32 %v186, 1.0
  %v189 = vadd.f32 %v187, 1.0
  %v190 = vmul.f32 %v174, %v188
  %v191 = vmul.f32 %v175, %v189
  %192 = vst [vmem:[%s5] sm:$0xff] %v190
  %193 = vst [vmem:[%s5 + $0x8] sm:$0xff] %v191
  // Predicated region
  $region22: #{gpt2_forward.14} parent=0 // pred_check
    _
  $region23: #{gpt2_forward.14} parent=0 // pred_check_branch
    %195 = sbr.rel (0) target = $region25
  $region24: #{gpt2_forward.14} parent=0 // pred_region
    _
  $region25: #{gpt2_forward.14} parent=0 // pred_fallthru
    _
  // Predicated region
  $region26: #{gpt2_forward.14} parent=0 // pred_check
    _
  $region27: #{gpt2_forward.14} parent=0 // pred_check_branch
    %197 = sbr.rel (0) target = $region29
  $region28: #{gpt2_forward.14} parent=0 // pred_region
    _
  $region29: #{gpt2_forward.14} parent=0 // pred_fallthru
    _

// kernel: gpt2_forward.12
$region0: #{gpt2_forward.12}
  #allocation0 [shape = 'u32[]', space=smem, size = 0x4, offset = 0x4, fixed_abs, tag = 'smem constant byte address 0x4 - core index']
  #allocation1 [shape = 'u32[144,128]{1,0:T(1,128)}', space=vmem, size = 0x12000, scoped, tag = 'internal scratch']
  %s0 = inlined_call_operand.vmem [shape: f32[2,8,96], index: 0, kind: input, shape index: {}]
  %s1 = inlined_call_operand.vmem [shape: f32[2,8,32], index: 1, kind: output, shape index: {}]
  %s2 = sld [smem:[#allocation0]]
  $region37: #{gpt2_forward.12} parent=0
    _
  %s4 = ssub.s32 1, %s2
  %s5 = scalar_select 0, %s4, %s2
  loop: start=0, step=1, limit=4
  $region2: #{gpt2_forward.12} parent=0 // loop_pre_header
    _
  $region3: #{gpt2_forward.12} parent=0 // loop_header
    %s7 = sphi 0, %s11
    %p8 = scmp.ge.s32.totalorder %s7, 4
    %s17 = sphi 0, %s19
    %s20 = sphi 0, %s17
    %s21 = sphi 0, %s20
    %s37 = sphi 0, %s21
    %s43 = sphi 0, %s45
    %s46 = sphi 0, %s43
    %s47 = sphi 0, %s46
    %s63 = sphi 0, %s47
  $region4: #{gpt2_forward.12} parent=0 // loop_header_branch
    %10 = sbr.rel (%p8) target = $region8
  $region5: #{gpt2_forward.12} parent=0 // loop_body
    %s12 = ssub.s32 %s7, 1
    %s13 = ssub.s32 %s7, 2
    %s14 = sadd.s32 %s7, 1
    %s15 = ssub.s32 %s7, %s14
    %p16 = scmp.eq.s32.totalorder %s15, 0
    %s18 = sadd.s32 %s17, 1
    %s19 = scalar_select %p16, %s17, %s18
    %p22 = pneg %p16
    %p23 = scmp.eq.s32.totalorder %s7, 1
    %p24 = por %p22, %p23
    %p25 = scmp.ne.s32.totalorder %s17, %s20
    %p26 = scmp.eq.s32.totalorder %s7, 0
    %p27 = por %p25, %p26
    %p28 = scmp.ne.s32.totalorder %s17, %s20
    %p29 = scmp.eq.s32.totalorder %s12, 1
    %p30 = por %p28, %p29
    %p31 = scmp.ne.s32.totalorder %s20, %s21
    %p32 = scmp.eq.s32.totalorder %s12, 0
    %p33 = por %p31, %p32
    %p34 = scmp.ne.s32.totalorder %s20, %s21
    %p35 = scmp.eq.s32.totalorder %s13, 1
    %p36 = por %p34, %p35
    %p38 = scmp.ne.s32.totalorder %s21, %s37
    %p39 = scmp.eq.s32.totalorder %s13, 0
    %p40 = por %p38, %p39
    %s41 = ssub.s32 %s7, %s14
    %p42 = scmp.eq.s32.totalorder %s41, 0
    %s44 = sadd.s32 %s43, 1
    %s45 = scalar_select %p42, %s43, %s44
    %p48 = pneg %p42
    %p49 = scmp.eq.s32.totalorder %s7, 1
    %p50 = por %p48, %p49
    %p51 = scmp.ne.s32.totalorder %s43, %s46
    %p52 = scmp.eq.s32.totalorder %s7, 0
    %p53 = por %p51, %p52
    %p54 = scmp.ne.s32.totalorder %s43, %s46
    %p55 = scmp.eq.s32.totalorder %s12, 1
    %p56 = por %p54, %p55
    %p57 = scmp.ne.s32.totalorder %s46, %s47
    %p58 = scmp.eq.s32.totalorder %s12, 0
    %p59 = por %p57, %p58
    %p60 = scmp.ne.s32.totalorder %s46, %s47
    %p61 = scmp.eq.s32.totalorder %s13, 1
    %p62 = por %p60, %p61
    %p64 = scmp.ne.s32.totalorder %s47, %s63
    %p65 = scmp.eq.s32.totalorder %s13, 0
    %p66 = por %p64, %p65
    %p67 = scmp.le.s32.totalorder 1, %s7
    %p68 = scmp.lt.s32.totalorder %s7, 3
    %p69 = pnand %p67, %p68
    %p70 = pneg %p69
    // Predicated region
    $region9: #{gpt2_forward.12} parent=5 // pred_check
      _
    $region10: #{gpt2_forward.12} parent=5 // pred_check_branch
      %72 = sbr.rel (%p69) target = $region12
    $region11: #{gpt2_forward.12} parent=5 // pred_region
      %s73 = ssub.s32 %s7, 1
    $region12: #{gpt2_forward.12} parent=5 // pred_fallthru
      _
    %p74 = scmp.lt.s32.totalorder %s7, 2
    // Predicated region
    $region13: #{gpt2_forward.12} parent=5 // pred_check
      %p75 = pneg %p74
    $region14: #{gpt2_forward.12} parent=5 // pred_check_branch
      %77 = sbr.rel (%p75) target = $region16
    $region15: #{gpt2_forward.12} parent=5 // pred_region
      // Predicated region
      $region17: #{gpt2_forward.12} parent=15 // pred_check
        %p78 = pneg %p27
      $region18: #{gpt2_forward.12} parent=15 // pred_check_branch
        %80 = sbr.rel (%p78) target = $region20
      $region19: #{gpt2_forward.12} parent=15 // pred_region
        %p81 = scmp.lt.s32.totalorder %s7, 1
        %s82 = scalar_select %p81, %s7, 1
        %s83 = smul.addr %s82, 8
        %s84 = scalar_lea.vmem %s0, %s83
      $region20: #{gpt2_forward.12} parent=15 // pred_fallthru
        _
    $region16: #{gpt2_forward.12} parent=5 // pred_fallthru
      _
    %p85 = scmp.le.s32.totalorder 1, %s7
    %p86 = scmp.lt.s32.totalorder %s7, 3
    %p87 = pnand %p85, %p86
    %p88 = pneg %p87
    // Predicated region
    $region21: #{gpt2_forward.12} parent=5 // pred_check
      _
    $region22: #{gpt2_forward.12} parent=5 // pred_check_branch
      %90 = sbr.rel (%p87) target = $region24
    $region23: #{gpt2_forward.12} parent=5 // pred_region
      %s91 = ssub.s32 %s7, 1
      %p92 = scmp.lt.s32.totalorder %s12, 1
      %s93 = scalar_select %p92, %s12, 1
      %s94 = smul.addr %s93, 8
      %s95 = scalar_lea.vmem %s0, %s94
      %p96 = pneg %p33
      %p97 = pneg %p30
      %p98 = pneg %p59
      %p99 = pneg %p56
      %p100 = scmp.lt.s32.totalorder %s12, 1
      %s101 = scalar_select %p100, %s12, 1
      %s102 = smul.addr %s101, 8
      %s103 = scalar_lea.vmem %s1, %s102
      %p104 = scmp.lt.s32.totalorder %s12, 1
      %s105 = scalar_select %p104, %s12, 1
      %s106 = smul.addr %s105, 8
      %s107 = scalar_lea.vmem %s0, %s106
      %p108 = scmp.lt.s32.totalorder %s12, 1
      %s109 = scalar_select %p108, %s12, 1
      %s110 = smul.addr %s109, 8
      %s111 = scalar_lea.vmem %s1, %s110
      %v112 = vld [vmem:[%s107] sm:$0xff]
      %v113 = vlaneseq
      %v114 = vshrl.u32 %v113, 7
      %v115 = vlaneseq
      %v116 = vand.u32 %v115, 127
      %v117 = vmul.f32 %v112, 0.35355338
      %119 = vrot.lane.b32.xlu0 %v112, 96
      %v120 = vpop.permute.xlu0 %119
      %vm121 = vcmask 64512
      %v123 = vsel %vm121, %v117, 0
      %v125 = vsel %vm121, %v120, 0
      %127 = vmatprep.subr.mxu0 0.0
      %128 = vmatpush1.xpose.msra.mxu0 0.0
      %129 = vmatprep.subr.mxu0 0.0
      %130 = vmatpush1.xpose.msra.mxu0 0.0
      %131 = vmatprep.subr.mxu0 0.0
      %132 = vmatpush1.xpose.msra.mxu0 0.0
      %133 = vmatprep.subr.mxu0 0.0
      %134 = vmatpush1.xpose.msra.mxu0 0.0
      %135 = vmatprep.subr.mxu0 0.0
      %136 = vmatpush1.xpose.msra.mxu0 0.0
      %137 = vmatprep.subr.mxu0 0.0
      %138 = vmatpush1.xpose.msra.mxu0 0.0
      %139 = vmatprep.subr.mxu0 0.0
      %140 = vmatpush1.xpose.msra.mxu0 0.0
      %141 = vmatprep.subr.mxu0 0.0
      %142 = vmatpush1.xpose.msra.mxu0 0.0
      %143 = vmatprep.subr.mxu0 0.0
      %144 = vmatpush1.xpose.msra.mxu0 0.0
      %145 = vmatprep.subr.mxu0 0.0
      %146 = vmatpush1.xpose.msra.mxu0 0.0
      %147 = vmatprep.subr.mxu0 0.0
      %148 = vmatpush1.xpose.msra.mxu0 0.0
      %149 = vmatprep.subr.mxu0 0.0
      %150 = vmatpush1.xpose.msra.mxu0 0.0
      %151 = vmatprep.subr.mxu0 0.0
      %152 = vmatpush1.xpose.msra.mxu0 0.0
      %153 = vmatprep.subr.mxu0 0.0
      %154 = vmatpush1.xpose.msra.mxu0 0.0
      %155 = vmatprep.subr.mxu0 0.0
      %156 = vmatpush1.xpose.msra.mxu0 0.0
      %157 = vmatprep.subr.mxu0 0.0
      %158 = vmatpush1.xpose.msra.mxu0 %v125
      %159 = vmatprep.subr.mxu0 0.0
      %160 = vmatpush2.xpose.msra.mxu0 0.0
      %161 = vmatprep.subr.mxu0 0.0
      %162 = vmatpush2.xpose.msra.mxu0 0.0
      %163 = vmatprep.subr.mxu0 0.0
      %164 = vmatpush2.xpose.msra.mxu0 0.0
      %165 = vmatprep.subr.mxu0 0.0
      %166 = vmatpush2.xpose.msra.mxu0 0.0
      %167 = vmatprep.subr.mxu0 0.0
      %168 = vmatpush2.xpose.msra.mxu0 0.0
      %169 = vmatprep.subr.mxu0 0.0
      %170 = vmatpush2.xpose.msra.mxu0 0.0
      %171 = vmatprep.subr.mxu0 0.0
      %172 = vmatpush2.xpose.msra.mxu0 0.0
      %173 = vmatprep.subr.mxu0 0.0
      %174 = vmatpush2.xpose.msra.mxu0 0.0
      %175 = vmatprep.subr.mxu0 0.0
      %176 = vmatpush2.xpose.msra.mxu0 0.0
      %177 = vmatprep.subr.mxu0 0.0
      %178 = vmatpush2.xpose.msra.mxu0 0.0
      %179 = vmatprep.subr.mxu0 0.0
      %180 = vmatpush2.xpose.msra.mxu0 0.0
      %181 = vmatprep.subr.mxu0 0.0
      %182 = vmatpush2.xpose.msra.mxu0 0.0
      %183 = vmatprep.subr.mxu0 0.0
      %184 = vmatpush2.xpose.msra.mxu0 0.0
      %185 = vmatprep.subr.mxu0 0.0
      %186 = vmatpush2.xpose.msra.mxu0 0.0
      %187 = vmatprep.subr.mxu0 0.0
      %188 = vmatpush2.xpose.msra.mxu0 0.0
      %189 = vmatprep.subr.mxu0 0.0
      %190 = vmatpush2.xpose.msra.mxu0 0.0
      %191 = vmatprep.mubr.f32.mxu0 0.0
      %192 = vmatmul.mubr.f32.gmra.mxu0 %v123
      %v193 = vpop.f32.mrf.mxu0
      %v194 = vadd.f32 0.0, %v193
      %v195 = vpop.f32.mrf.mxu0
      %196 = vdwg.mxu0
      %vm197 = vcmp.gt.s32.totalorder %v116, %v114
      %v198 = vsel %vm197, -1e+30, %v194
      %v199 = vsel %vm121, %v198, -inf
      %200 = vmax.xlane.f32.xlu0 %v199
      %v201 = vpop.xlane.xlu0 %200
      %v202 = vsub.f32 %v198, %v201
      %v203 = vmul.f32 %v202, 1.442695
      %v204 = vpow.pop %v203
      %v205 = vsel %vm121, %v204, 0.0
      %206 = vadd.xlane.f32.xlu0 %v205
      %v207 = vpop.xlane.xlu0 %206
      %v208 = vrcp.pop %v207
      %v209 = vmul.f32 %v204, %v208
      %210 = vrot.lane.b32.xlu0 %v112, 64
      %v211 = vpop.permute.xlu0 %210
      %v214 = vsel %vm121, %v209, 0
      %216 = vmatprep.subr.mxu0 0.0
      %217 = vmatpush1.msra.mxu0 0.0
      %218 = vmatprep.subr.mxu0 0.0
      %219 = vmatpush1.msra.mxu0 0.0
      %220 = vmatprep.subr.mxu0 0.0
      %221 = vmatpush1.msra.mxu0 0.0
      %222 = vmatprep.subr.mxu0 0.0
      %223 = vmatpush1.msra.mxu0 0.0
      %224 = vmatprep.subr.mxu0 0.0
      %225 = vmatpush1.msra.mxu0 0.0
      %226 = vmatprep.subr.mxu0 0.0
      %227 = vmatpush1.msra.mxu0 0.0
      %228 = vmatprep.subr.mxu0 0.0
      %229 = vmatpush1.msra.mxu0 0.0
      %230 = vmatprep.subr.mxu0 0.0
      %231 = vmatpush1.msra.mxu0 0.0
      %232 = vmatprep.subr.mxu0 0.0
      %233 = vmatpush1.msra.mxu0 0.0
      %234 = vmatprep.subr.mxu0 0.0
      %235 = vmatpush1.msra.mxu0 0.0
      %236 = vmatprep.subr.mxu0 0.0
      %237 = vmatpush1.msra.mxu0 0.0
      %238 = vmatprep.subr.mxu0 0.0
      %239 = vmatpush1.msra.mxu0 0.0
      %240 = vmatprep.subr.mxu0 0.0
      %241 = vmatpush1.msra.mxu0 0.0
      %242 = vmatprep.subr.mxu0 0.0
      %243 = vmatpush1.msra.mxu0 0.0
      %244 = vmatprep.subr.mxu0 0.0
      %245 = vmatpush1.msra.mxu0 0.0
      %246 = vmatprep.subr.mxu0 0.0
      %247 = vmatpush1.msra.mxu0 %v211
      %248 = vmatprep.subr.mxu0 0.0
      %249 = vmatpush2.msra.mxu0 0.0
      %250 = vmatprep.subr.mxu0 0.0
      %251 = vmatpush2.msra.mxu0 0.0
      %252 = vmatprep.subr.mxu0 0.0
      %253 = vmatpush2.msra.mxu0 0.0
      %254 = vmatprep.subr.mxu0 0.0
      %255 = vmatpush2.msra.mxu0 0.0
      %256 = vmatprep.subr.mxu0 0.0
      %257 = vmatpush2.msra.mxu0 0.0
      %258 = vmatprep.subr.mxu0 0.0
      %259 = vmatpush2.msra.mxu0 0.0
      %260 = vmatprep.subr.mxu0 0.0
      %261 = vmatpush2.msra.mxu0 0.0
      %262 = vmatprep.subr.mxu0 0.0
      %263 = vmatpush2.msra.mxu0 0.0
      %264 = vmatprep.subr.mxu0 0.0
      %265 = vmatpush2.msra.mxu0 0.0
      %266 = vmatprep.subr.mxu0 0.0
      %267 = vmatpush2.msra.mxu0 0.0
      %268 = vmatprep.subr.mxu0 0.0
      %269 = vmatpush2.msra.mxu0 0.0
      %270 = vmatprep.subr.mxu0 0.0
      %271 = vmatpush2.msra.mxu0 0.0
      %272 = vmatprep.subr.mxu0 0.0
      %273 = vmatpush2.msra.mxu0 0.0
      %274 = vmatprep.subr.mxu0 0.0
      %275 = vmatpush2.msra.mxu0 0.0
      %276 = vmatprep.subr.mxu0 0.0
      %277 = vmatpush2.msra.mxu0 0.0
      %278 = vmatprep.subr.mxu0 0.0
      %279 = vmatpush2.msra.mxu0 0.0
      %280 = vmatprep.mubr.f32.mxu0 0.0
      %281 = vmatmul.mubr.f32.gmra.mxu0 %v214
      %v282 = vpop.f32.mrf.mxu0
      %v283 = vadd.f32 0.0, %v282
      %v284 = vpop.f32.mrf.mxu0
      %285 = vdwg.mxu0
      %286 = vrot.lane.b32.xlu0 %v117, 120
      %v287 = vpop.permute.xlu0 %286
      %288 = vrot.lane.b32.xlu0 %v112, 88
      %v289 = vpop.permute.xlu0 %288
      %v290 = vsel %vm121, %v287, 0
      %v292 = vsel %vm121, %v289, 0
      %294 = vmatprep.subr.mxu0 0.0
      %295 = vmatpush1.xpose.msra.mxu0 0.0
      %296 = vmatprep.subr.mxu0 0.0
      %297 = vmatpush1.xpose.msra.mxu0 0.0
      %298 = vmatprep.subr.mxu0 0.0
      %299 = vmatpush1.xpose.msra.mxu0 0.0
      %300 = vmatprep.subr.mxu0 0.0
      %301 = vmatpush1.xpose.msra.mxu0 0.0
      %302 = vmatprep.subr.mxu0 0.0
      %303 = vmatpush1.xpose.msra.mxu0 0.0
      %304 = vmatprep.subr.mxu0 0.0
      %305 = vmatpush1.xpose.msra.mxu0 0.0
      %306 = vmatprep.subr.mxu0 0.0
      %307 = vmatpush1.xpose.msra.mxu0 0.0
      %308 = vmatprep.subr.mxu0 0.0
      %309 = vmatpush1.xpose.msra.mxu0 0.0
      %310 = vmatprep.subr.mxu0 0.0
      %311 = vmatpush1.xpose.msra.mxu0 0.0
      %312 = vmatprep.subr.mxu0 0.0
      %313 = vmatpush1.xpose.msra.mxu0 0.0
      %314 = vmatprep.subr.mxu0 0.0
      %315 = vmatpush1.xpose.msra.mxu0 0.0
      %316 = vmatprep.subr.mxu0 0.0
      %317 = vmatpush1.xpose.msra.mxu0 0.0
      %318 = vmatprep.subr.mxu0 0.0
      %319 = vmatpush1.xpose.msra.mxu0 0.0
      %320 = vmatprep.subr.mxu0 0.0
      %321 = vmatpush1.xpose.msra.mxu0 0.0
      %322 = vmatprep.subr.mxu0 0.0
      %323 = vmatpush1.xpose.msra.mxu0 0.0
      %324 = vmatprep.subr.mxu0 0.0
      %325 = vmatpush1.xpose.msra.mxu0 %v292
      %326 = vmatprep.subr.mxu0 0.0
      %327 = vmatpush2.xpose.msra.mxu0 0.0
      %328 = vmatprep.subr.mxu0 0.0
      %329 = vmatpush2.xpose.msra.mxu0 0.0
      %330 = vmatprep.subr.mxu0 0.0
      %331 = vmatpush2.xpose.msra.mxu0 0.0
      %332 = vmatprep.subr.mxu0 0.0
      %333 = vmatpush2.xpose.msra.mxu0 0.0
      %334 = vmatprep.subr.mxu0 0.0
      %335 = vmatpush2.xpose.msra.mxu0 0.0
      %336 = vmatprep.subr.mxu0 0.0
      %337 = vmatpush2.xpose.msra.mxu0 0.0
      %338 = vmatprep.subr.mxu0 0.0
      %339 = vmatpush2.xpose.msra.mxu0 0.0
      %340 = vmatprep.subr.mxu0 0.0
      %341 = vmatpush2.xpose.msra.mxu0 0.0
      %342 = vmatprep.subr.mxu0 0.0
      %343 = vmatpush2.xpose.msra.mxu0 0.0
      %344 = vmatprep.subr.mxu0 0.0
      %345 = vmatpush2.xpose.msra.mxu0 0.0
      %346 = vmatprep.subr.mxu0 0.0
      %347 = vmatpush2.xpose.msra.mxu0 0.0
      %348 = vmatprep.subr.mxu0 0.0
      %349 = vmatpush2.xpose.msra.mxu0 0.0
      %350 = vmatprep.subr.mxu0 0.0
      %351 = vmatpush2.xpose.msra.mxu0 0.0
      %352 = vmatprep.subr.mxu0 0.0
      %353 = vmatpush2.xpose.msra.mxu0 0.0
      %354 = vmatprep.subr.mxu0 0.0
      %355 = vmatpush2.xpose.msra.mxu0 0.0
      %356 = vmatprep.subr.mxu0 0.0
      %357 = vmatpush2.xpose.msra.mxu0 0.0
      %358 = vmatprep.mubr.f32.mxu0 0.0
      %359 = vmatmul.mubr.f32.gmra.mxu0 %v290
      %v360 = vpop.f32.mrf.mxu0
      %v361 = vadd.f32 0.0, %v360
      %v362 = vpop.f32.mrf.mxu0
      %363 = vdwg.mxu0
      %v364 = vsel %vm197, -1e+30, %v361
      %v365 = vsel %vm121, %v364, -inf
      %366 = vmax.xlane.f32.xlu0 %v365
      %v367 = vpop.xlane.xlu0 %366
      %v368 = vsub.f32 %v364, %v367
      %v369 = vmul.f32 %v368, 1.442695
      %v370 = vpow.pop %v369
      %v371 = vsel %vm121, %v370, 0.0
      %372 = vadd.xlane.f32.xlu0 %v371
      %v373 = vpop.xlane.xlu0 %372
      %v374 = vrcp.pop %v373
      %v375 = vmul.f32 %v370, %v374
      %376 = vrot.lane.b32.xlu0 %v112, 56
      %v377 = vpop.permute.xlu0 %376
      %v380 = vsel %vm121, %v375, 0
      %382 = vmatprep.subr.mxu0 0.0
      %383 = vmatpush1.msra.mxu0 0.0
      %384 = vmatprep.subr.mxu0 0.0
      %385 = vmatpush1.msra.mxu0 0.0
      %386 = vmatprep.subr.mxu0 0.0
      %387 = vmatpush1.msra.mxu0 0.0
      %388 = vmatprep.subr.mxu0 0.0
      %389 = vmatpush1.msra.mxu0 0.0
      %390 = vmatprep.subr.mxu0 0.0
      %391 = vmatpush1.msra.mxu0 0.0
      %392 = vmatprep.subr.mxu0 0.0
      %393 = vmatpush1.msra.mxu0 0.0
      %394 = vmatprep.subr.mxu0 0.0
      %395 = vmatpush1.msra.mxu0 0.0
      %396 = vmatprep.subr.mxu0 0.0
      %397 = vmatpush1.msra.mxu0 0.0
      %398 = vmatprep.subr.mxu0 0.0
      %399 = vmatpush1.msra.mxu0 0.0
      %400 = vmatprep.subr.mxu0 0.0
      %401 = vmatpush1.msra.mxu0 0.0
      %402 = vmatprep.subr.mxu0 0.0
      %403 = vmatpush1.msra.mxu0 0.0
      %404 = vmatprep.subr.mxu0 0.0
      %405 = vmatpush1.msra.mxu0 0.0
      %406 = vmatprep.subr.mxu0 0.0
      %407 = vmatpush1.msra.mxu0 0.0
      %408 = vmatprep.subr.mxu0 0.0
      %409 = vmatpush1.msra.mxu0 0.0
      %410 = vmatprep.subr.mxu0 0.0
      %411 = vmatpush1.msra.mxu0 0.0
      %412 = vmatprep.subr.mxu0 0.0
      %413 = vmatpush1.msra.mxu0 %v377
      %414 = vmatprep.subr.mxu0 0.0
      %415 = vmatpush2.msra.mxu0 0.0
      %416 = vmatprep.subr.mxu0 0.0
      %417 = vmatpush2.msra.mxu0 0.0
      %418 = vmatprep.subr.mxu0 0.0
      %419 = vmatpush2.msra.mxu0 0.0
      %420 = vmatprep.subr.mxu0 0.0
      %421 = vmatpush2.msra.mxu0 0.0
      %422 = vmatprep.subr.mxu0 0.0
      %423 = vmatpush2.msra.mxu0 0.0
      %424 = vmatprep.subr.mxu0 0.0
      %425 = vmatpush2.msra.mxu0 0.0
      %426 = vmatprep.subr.mxu0 0.0
      %427 = vmatpush2.msra.mxu0 0.0
      %428 = vmatprep.subr.mxu0 0.0
      %429 = vmatpush2.msra.mxu0 0.0
      %430 = vmatprep.subr.mxu0 0.0
      %431 = vmatpush2.msra.mxu0 0.0
      %432 = vmatprep.subr.mxu0 0.0
      %433 = vmatpush2.msra.mxu0 0.0
      %434 = vmatprep.subr.mxu0 0.0
      %435 = vmatpush2.msra.mxu0 0.0
      %436 = vmatprep.subr.mxu0 0.0
      %437 = vmatpush2.msra.mxu0 0.0
      %438 = vmatprep.subr.mxu0 0.0
      %439 = vmatpush2.msra.mxu0 0.0
      %440 = vmatprep.subr.mxu0 0.0
      %441 = vmatpush2.msra.mxu0 0.0
      %442 = vmatprep.subr.mxu0 0.0
      %443 = vmatpush2.msra.mxu0 0.0
      %444 = vmatprep.subr.mxu0 0.0
      %445 = vmatpush2.msra.mxu0 0.0
      %446 = vmatprep.mubr.f32.mxu0 0.0
      %447 = vmatmul.mubr.f32.gmra.mxu0 %v380
      %v448 = vpop.f32.mrf.mxu0
      %v449 = vadd.f32 0.0, %v448
      %v450 = vpop.f32.mrf.mxu0
      %451 = vdwg.mxu0
      %452 = vrot.lane.b32.xlu0 %v117, 112
      %v453 = vpop.permute.xlu0 %452
      %454 = vrot.lane.b32.xlu0 %v112, 80
      %v455 = vpop.permute.xlu0 %454
      %v456 = vsel %vm121, %v453, 0
      %v458 = vsel %vm121, %v455, 0
      %460 = vmatprep.subr.mxu0 0.0
      %461 = vmatpush1.xpose.msra.mxu0 0.0
      %462 = vmatprep.subr.mxu0 0.0
      %463 = vmatpush1.xpose.msra.mxu0 0.0
      %464 = vmatprep.subr.mxu0 0.0
      %465 = vmatpush1.xpose.msra.mxu0 0.0
      %466 = vmatprep.subr.mxu0 0.0
      %467 = vmatpush1.xpose.msra.mxu0 0.0
      %468 = vmatprep.subr.mxu0 0.0
      %469 = vmatpush1.xpose.msra.mxu0 0.0
      %470 = vmatprep.subr.mxu0 0.0
      %471 = vmatpush1.xpose.msra.mxu0 0.0
      %472 = vmatprep.subr.mxu0 0.0
      %473 = vmatpush1.xpose.msra.mxu0 0.0
      %474 = vmatprep.subr.mxu0 0.0
      %475 = vmatpush1.xpose.msra.mxu0 0.0
      %476 = vmatprep.subr.mxu0 0.0
      %477 = vmatpush1.xpose.msra.mxu0 0.0
      %478 = vmatprep.subr.mxu0 0.0
      %479 = vmatpush1.xpose.msra.mxu0 0.0
      %480 = vmatprep.subr.mxu0 0.0
      %481 = vmatpush1.xpose.msra.mxu0 0.0
      %482 = vmatprep.subr.mxu0 0.0
      %483 = vmatpush1.xpose.msra.mxu0 0.0
      %484 = vmatprep.subr.mxu0 0.0
      %485 = vmatpush1.xpose.msra.mxu0 0.0
      %486 = vmatprep.subr.mxu0 0.0
      %487 = vmatpush1.xpose.msra.mxu0 0.0
      %488 = vmatprep.subr.mxu0 0.0
      %489 = vmatpush1.xpose.msra.mxu0 0.0
      %490 = vmatprep.subr.mxu0 0.0
      %491 = vmatpush1.xpose.msra.mxu0 %v458
      %492 = vmatprep.subr.mxu0 0.0
      %493 = vmatpush2.xpose.msra.mxu0 0.0
      %494 = vmatprep.subr.mxu0 0.0
      %495 = vmatpush2.xpose.msra.mxu0 0.0
      %496 = vmatprep.subr.mxu0 0.0
      %497 = vmatpush2.xpose.msra.mxu0 0.0
      %498 = vmatprep.subr.mxu0 0.0
      %499 = vmatpush2.xpose.msra.mxu0 0.0
      %500 = vmatprep.subr.mxu0 0.0
      %501 = vmatpush2.xpose.msra.mxu0 0.0
      %502 = vmatprep.subr.mxu0 0.0
      %503 = vmatpush2.xpose.msra.mxu0 0.0
      %504 = vmatprep.subr.mxu0 0.0
      %505 = vmatpush2.xpose.msra.mxu0 0.0
      %506 = vmatprep.subr.mxu0 0.0
      %507 = vmatpush2.xpose.msra.mxu0 0.0
      %508 = vmatprep.subr.mxu0 0.0
      %509 = vmatpush2.xpose.msra.mxu0 0.0
      %510 = vmatprep.subr.mxu0 0.0
      %511 = vmatpush2.xpose.msra.mxu0 0.0
      %512 = vmatprep.subr.mxu0 0.0
      %513 = vmatpush2.xpose.msra.mxu0 0.0
      %514 = vmatprep.subr.mxu0 0.0
      %515 = vmatpush2.xpose.msra.mxu0 0.0
      %516 = vmatprep.subr.mxu0 0.0
      %517 = vmatpush2.xpose.msra.mxu0 0.0
      %518 = vmatprep.subr.mxu0 0.0
      %519 = vmatpush2.xpose.msra.mxu0 0.0
      %520 = vmatprep.subr.mxu0 0.0
      %521 = vmatpush2.xpose.msra.mxu0 0.0
      %522 = vmatprep.subr.mxu0 0.0
      %523 = vmatpush2.xpose.msra.mxu0 0.0
      %524 = vmatprep.mubr.f32.mxu0 0.0
      %525 = vmatmul.mubr.f32.gmra.mxu0 %v456
      %v526 = vpop.f32.mrf.mxu0
      %v527 = vadd.f32 0.0, %v526
      %v528 = vpop.f32.mrf.mxu0
      %529 = vdwg.mxu0
      %v530 = vsel %vm197, -1e+30, %v527
      %v531 = vsel %vm121, %v530, -inf
      %532 = vmax.xlane.f32.xlu0 %v531
      %v533 = vpop.xlane.xlu0 %532
      %v534 = vsub.f32 %v530, %v533
      %v535 = vmul.f32 %v534, 1.442695
      %v536 = vpow.pop %v535
      %v537 = vsel %vm121, %v536, 0.0
      %538 = vadd.xlane.f32.xlu0 %v537
      %v539 = vpop.xlane.xlu0 %538
      %v540 = vrcp.pop %v539
      %v541 = vmul.f32 %v536, %v540
      %542 = vrot.lane.b32.xlu0 %v112, 48
      %v543 = vpop.permute.xlu0 %542
      %v546 = vsel %vm121, %v541, 0
      %548 = vmatprep.subr.mxu0 0.0
      %549 = vmatpush1.msra.mxu0 0.0
      %550 = vmatprep.subr.mxu0 0.0
      %551 = vmatpush1.msra.mxu0 0.0
      %552 = vmatprep.subr.mxu0 0.0
      %553 = vmatpush1.msra.mxu0 0.0
      %554 = vmatprep.subr.mxu0 0.0
      %555 = vmatpush1.msra.mxu0 0.0
      %556 = vmatprep.subr.mxu0 0.0
      %557 = vmatpush1.msra.mxu0 0.0
      %558 = vmatprep.subr.mxu0 0.0
      %559 = vmatpush1.msra.mxu0 0.0
      %560 = vmatprep.subr.mxu0 0.0
      %561 = vmatpush1.msra.mxu0 0.0
      %562 = vmatprep.subr.mxu0 0.0
      %563 = vmatpush1.msra.mxu0 0.0
      %564 = vmatprep.subr.mxu0 0.0
      %565 = vmatpush1.msra.mxu0 0.0
      %566 = vmatprep.subr.mxu0 0.0
      %567 = vmatpush1.msra.mxu0 0.0
      %568 = vmatprep.subr.mxu0 0.0
      %569 = vmatpush1.msra.mxu0 0.0
      %570 = vmatprep.subr.mxu0 0.0
      %571 = vmatpush1.msra.mxu0 0.0
      %572 = vmatprep.subr.mxu0 0.0
      %573 = vmatpush1.msra.mxu0 0.0
      %574 = vmatprep.subr.mxu0 0.0
      %575 = vmatpush1.msra.mxu0 0.0
      %576 = vmatprep.subr.mxu0 0.0
      %577 = vmatpush1.msra.mxu0 0.0
      %578 = vmatprep.subr.mxu0 0.0
      %579 = vmatpush1.msra.mxu0 %v543
      %580 = vmatprep.subr.mxu0 0.0
      %581 = vmatpush2.msra.mxu0 0.0
      %582 = vmatprep.subr.mxu0 0.0
      %583 = vmatpush2.msra.mxu0 0.0
      %584 = vmatprep.subr.mxu0 0.0
      %585 = vmatpush2.msra.mxu0 0.0
      %586 = vmatprep.subr.mxu0 0.0
      %587 = vmatpush2.msra.mxu0 0.0
      %588 = vmatprep.subr.mxu0 0.0
      %589 = vmatpush2.msra.mxu0 0.0
      %590 = vmatprep.subr.mxu0 0.0
      %591 = vmatpush2.msra.mxu0 0.0
      %592 = vmatprep.subr.mxu0 0.0
      %593 = vmatpush2.msra.mxu0 0.0
      %594 = vmatprep.subr.mxu0 0.0
      %595 = vmatpush2.msra.mxu0 0.0
      %596 = vmatprep.subr.mxu0 0.0
      %597 = vmatpush2.msra.mxu0 0.0
      %598 = vmatprep.subr.mxu0 0.0
      %599 = vmatpush2.msra.mxu0 0.0
      %600 = vmatprep.subr.mxu0 0.0
      %601 = vmatpush2.msra.mxu0 0.0
      %602 = vmatprep.subr.mxu0 0.0
      %603 = vmatpush2.msra.mxu0 0.0
      %604 = vmatprep.subr.mxu0 0.0
      %605 = vmatpush2.msra.mxu0 0.0
      %606 = vmatprep.subr.mxu0 0.0
      %607 = vmatpush2.msra.mxu0 0.0
      %608 = vmatprep.subr.mxu0 0.0
      %609 = vmatpush2.msra.mxu0 0.0
      %610 = vmatprep.subr.mxu0 0.0
      %611 = vmatpush2.msra.mxu0 0.0
      %612 = vmatprep.mubr.f32.mxu0 0.0
      %613 = vmatmul.mubr.f32.gmra.mxu0 %v546
      %v614 = vpop.f32.mrf.mxu0
      %v615 = vadd.f32 0.0, %v614
      %v616 = vpop.f32.mrf.mxu0
      %617 = vdwg.mxu0
      %618 = vrot.lane.b32.xlu0 %v117, 104
      %v619 = vpop.permute.xlu0 %618
      %620 = vrot.lane.b32.xlu0 %v112, 72
      %v621 = vpop.permute.xlu0 %620
      %v622 = vsel %vm121, %v619, 0
      %v624 = vsel %vm121, %v621, 0
      %626 = vmatprep.subr.mxu0 0.0
      %627 = vmatpush1.xpose.msra.mxu0 0.0
      %628 = vmatprep.subr.mxu0 0.0
      %629 = vmatpush1.xpose.msra.mxu0 0.0
      %630 = vmatprep.subr.mxu0 0.0
      %631 = vmatpush1.xpose.msra.mxu0 0.0
      %632 = vmatprep.subr.mxu0 0.0
      %633 = vmatpush1.xpose.msra.mxu0 0.0
      %634 = vmatprep.subr.mxu0 0.0
      %635 = vmatpush1.xpose.msra.mxu0 0.0
      %636 = vmatprep.subr.mxu0 0.0
      %637 = vmatpush1.xpose.msra.mxu0 0.0
      %638 = vmatprep.subr.mxu0 0.0
      %639 = vmatpush1.xpose.msra.mxu0 0.0
      %640 = vmatprep.subr.mxu0 0.0
      %641 = vmatpush1.xpose.msra.mxu0 0.0
      %642 = vmatprep.subr.mxu0 0.0
      %643 = vmatpush1.xpose.msra.mxu0 0.0
      %644 = vmatprep.subr.mxu0 0.0
      %645 = vmatpush1.xpose.msra.mxu0 0.0
      %646 = vmatprep.subr.mxu0 0.0
      %647 = vmatpush1.xpose.msra.mxu0 0.0
      %648 = vmatprep.subr.mxu0 0.0
      %649 = vmatpush1.xpose.msra.mxu0 0.0
      %650 = vmatprep.subr.mxu0 0.0
      %651 = vmatpush1.xpose.msra.mxu0 0.0
      %652 = vmatprep.subr.mxu0 0.0
      %653 = vmatpush1.xpose.msra.mxu0 0.0
      %654 = vmatprep.subr.mxu0 0.0
      %655 = vmatpush1.xpose.msra.mxu0 0.0
      %656 = vmatprep.subr.mxu0 0.0
      %657 = vmatpush1.xpose.msra.mxu0 %v624
      %658 = vmatprep.subr.mxu0 0.0
      %659 = vmatpush2.xpose.msra.mxu0 0.0
      %660 = vmatprep.subr.mxu0 0.0
      %661 = vmatpush2.xpose.msra.mxu0 0.0
      %662 = vmatprep.subr.mxu0 0.0
      %663 = vmatpush2.xpose.msra.mxu0 0.0
      %664 = vmatprep.subr.mxu0 0.0
      %665 = vmatpush2.xpose.msra.mxu0 0.0
      %666 = vmatprep.subr.mxu0 0.0
      %667 = vmatpush2.xpose.msra.mxu0 0.0
      %668 = vmatprep.subr.mxu0 0.0
      %669 = vmatpush2.xpose.msra.mxu0 0.0
      %670 = vmatprep.subr.mxu0 0.0
      %671 = vmatpush2.xpose.msra.mxu0 0.0
      %672 = vmatprep.subr.mxu0 0.0
      %673 = vmatpush2.xpose.msra.mxu0 0.0
      %674 = vmatprep.subr.mxu0 0.0
      %675 = vmatpush2.xpose.msra.mxu0 0.0
      %676 = vmatprep.subr.mxu0 0.0
      %677 = vmatpush2.xpose.msra.mxu0 0.0
      %678 = vmatprep.subr.mxu0 0.0
      %679 = vmatpush2.xpose.msra.mxu0 0.0
      %680 = vmatprep.subr.mxu0 0.0
      %681 = vmatpush2.xpose.msra.mxu0 0.0
      %682 = vmatprep.subr.mxu0 0.0
      %683 = vmatpush2.xpose.msra.mxu0 0.0
      %684 = vmatprep.subr.mxu0 0.0
      %685 = vmatpush2.xpose.msra.mxu0 0.0
      %686 = vmatprep.subr.mxu0 0.0
      %687 = vmatpush2.xpose.msra.mxu0 0.0
      %688 = vmatprep.subr.mxu0 0.0
      %689 = vmatpush2.xpose.msra.mxu0 0.0
      %690 = vmatprep.mubr.f32.mxu0 0.0
      %691 = vmatmul.mubr.f32.gmra.mxu0 %v622
      %v692 = vpop.f32.mrf.mxu0
      %v693 = vadd.f32 0.0, %v692
      %v694 = vpop.f32.mrf.mxu0
      %695 = vdwg.mxu0
      %v696 = vsel %vm197, -1e+30, %v693
      %v697 = vsel %vm121, %v696, -inf
      %698 = vmax.xlane.f32.xlu0 %v697
      %v699 = vpop.xlane.xlu0 %698
      %v700 = vsub.f32 %v696, %v699
      %v701 = vmul.f32 %v700, 1.442695
      %v702 = vpow.pop %v701
      %v703 = vsel %vm121, %v702, 0.0
      %704 = vadd.xlane.f32.xlu0 %v703
      %v705 = vpop.xlane.xlu0 %704
      %v706 = vrcp.pop %v705
      %v707 = vmul.f32 %v702, %v706
      %708 = vrot.lane.b32.xlu0 %v112, 40
      %v709 = vpop.permute.xlu0 %708
      %v712 = vsel %vm121, %v707, 0
      %714 = vmatprep.subr.mxu0 0.0
      %715 = vmatpush1.msra.mxu0 0.0
      %716 = vmatprep.subr.mxu0 0.0
      %717 = vmatpush1.msra.mxu0 0.0
      %718 = vmatprep.subr.mxu0 0.0
      %719 = vmatpush1.msra.mxu0 0.0
      %720 = vmatprep.subr.mxu0 0.0
      %721 = vmatpush1.msra.mxu0 0.0
      %722 = vmatprep.subr.mxu0 0.0
      %723 = vmatpush1.msra.mxu0 0.0
      %724 = vmatprep.subr.mxu0 0.0
      %725 = vmatpush1.msra.mxu0 0.0
      %726 = vmatprep.subr.mxu0 0.0
      %727 = vmatpush1.msra.mxu0 0.0
      %728 = vmatprep.subr.mxu0 0.0
      %729 = vmatpush1.msra.mxu0 0.0
      %730 = vmatprep.subr.mxu0 0.0
      %731 = vmatpush1.msra.mxu0 0.0
      %732 = vmatprep.subr.mxu0 0.0
      %733 = vmatpush1.msra.mxu0 0.0
      %734 = vmatprep.subr.mxu0 0.0
      %735 = vmatpush1.msra.mxu0 0.0
      %736 = vmatprep.subr.mxu0 0.0
      %737 = vmatpush1.msra.mxu0 0.0
      %738 = vmatprep.subr.mxu0 0.0
      %739 = vmatpush1.msra.mxu0 0.0
      %740 = vmatprep.subr.mxu0 0.0
      %741 = vmatpush1.msra.mxu0 0.0
      %742 = vmatprep.subr.mxu0 0.0
      %743 = vmatpush1.msra.mxu0 0.0
      %744 = vmatprep.subr.mxu0 0.0
      %745 = vmatpush1.msra.mxu0 %v709
      %746 = vmatprep.subr.mxu0 0.0
      %747 = vmatpush2.msra.mxu0 0.0
      %748 = vmatprep.subr.mxu0 0.0
      %749 = vmatpush2.msra.mxu0 0.0
      %750 = vmatprep.subr.mxu0 0.0
      %751 = vmatpush2.msra.mxu0 0.0
      %752 = vmatprep.subr.mxu0 0.0
      %753 = vmatpush2.msra.mxu0 0.0
      %754 = vmatprep.subr.mxu0 0.0
      %755 = vmatpush2.msra.mxu0 0.0
      %756 = vmatprep.subr.mxu0 0.0
      %757 = vmatpush2.msra.mxu0 0.0
      %758 = vmatprep.subr.mxu0 0.0
      %759 = vmatpush2.msra.mxu0 0.0
      %760 = vmatprep.subr.mxu0 0.0
      %761 = vmatpush2.msra.mxu0 0.0
      %762 = vmatprep.subr.mxu0 0.0
      %763 = vmatpush2.msra.mxu0 0.0
      %764 = vmatprep.subr.mxu0 0.0
      %765 = vmatpush2.msra.mxu0 0.0
      %766 = vmatprep.subr.mxu0 0.0
      %767 = vmatpush2.msra.mxu0 0.0
      %768 = vmatprep.subr.mxu0 0.0
      %769 = vmatpush2.msra.mxu0 0.0
      %770 = vmatprep.subr.mxu0 0.0
      %771 = vmatpush2.msra.mxu0 0.0
      %772 = vmatprep.subr.mxu0 0.0
      %773 = vmatpush2.msra.mxu0 0.0
      %774 = vmatprep.subr.mxu0 0.0
      %775 = vmatpush2.msra.mxu0 0.0
      %776 = vmatprep.subr.mxu0 0.0
      %777 = vmatpush2.msra.mxu0 0.0
      %778 = vmatprep.mubr.f32.mxu0 0.0
      %779 = vmatmul.mubr.f32.gmra.mxu0 %v712
      %v780 = vpop.f32.mrf.mxu0
      %v781 = vadd.f32 0.0, %v780
      %v782 = vpop.f32.mrf.mxu0
      %783 = vdwg.mxu0
      %785 = vrot.lane.b32.xlu0 %v449, 8
      %v786 = vpop.permute.xlu0 %785
      %789 = vrot.lane.b32.xlu0 %v615, 16
      %v790 = vpop.permute.xlu0 %789
      %793 = vrot.lane.b32.xlu0 %v781, 24
      %v794 = vpop.permute.xlu0 %793
      %v796 = vsel %vm121, %v283, %v786
      %vm797 = vcmask 130048
      %v798 = vsel %vm797, %v796, %v790
      %vm799 = vcmask 195584
      %v800 = vsel %vm799, %v798, %v794
      %vm801 = vcmask 261120
      %802 = vst.msk [vmem:[%s111] sm:$0xff] %vm801, %v800
      %p803 = scmp.lt.s32.totalorder %s12, 1
      %s804 = scalar_select %p803, %s12, 1
      %s805 = smul.addr %s804, 8
      %s806 = scalar_lea.vmem %s1, %s805
      // Predicated region
      $region25: #{gpt2_forward.12} parent=23 // pred_check
        %p807 = pneg %p56
      $region26: #{gpt2_forward.12} parent=23 // pred_check_branch
        %809 = sbr.rel (%p807) target = $region28
      $region27: #{gpt2_forward.12} parent=23 // pred_region
        _
      $region28: #{gpt2_forward.12} parent=23 // pred_fallthru
        _
    $region24: #{gpt2_forward.12} parent=5 // pred_fallthru
      _
    %p810 = scmp.le.s32.totalorder 2, %s7
    // Predicated region
    $region29: #{gpt2_forward.12} parent=5 // pred_check
      %p811 = pneg %p810
    $region30: #{gpt2_forward.12} parent=5 // pred_check_branch
      %813 = sbr.rel (%p811) target = $region32
    $region31: #{gpt2_forward.12} parent=5 // pred_region
      %s814 = ssub.s32 %s7, 2
      // Predicated region
      $region33: #{gpt2_forward.12} parent=31 // pred_check
        %p815 = pneg %p62
      $region34: #{gpt2_forward.12} parent=31 // pred_check_branch
        %817 = sbr.rel (%p815) target = $region36
      $region35: #{gpt2_forward.12} parent=31 // pred_region
        %p818 = scmp.lt.s32.totalorder %s13, 1
        %s819 = scalar_select %p818, %s13, 1
        %s820 = smul.addr %s819, 8
        %s821 = scalar_lea.vmem %s1, %s820
      $region36: #{gpt2_forward.12} parent=31 // pred_fallthru
        _
    $region32: #{gpt2_forward.12} parent=5 // pred_fallthru
      _
  $region6: #{gpt2_forward.12} parent=0 // loop_footer
    %s11 = sadd.s32 1, %s7
  $region7: #{gpt2_forward.12} parent=0 // loop_footer_branch
    %6 = sbr.rel target = $region3
  $region8: #{gpt2_forward.12} parent=0 // loop_exit
    _

// kernel: gpt2_forward.15
$region0: #{gpt2_forward.15}
  #allocation0 [shape = 'u32[]', space=smem, size = 0x4, offset = 0x4, fixed_abs, tag = 'smem constant byte address 0x4 - core index']
  #allocation1 [shape = 'u32[144,128]{1,0:T(1,128)}', space=vmem, size = 0x12000, scoped, tag = 'internal scratch']
  %s0 = inlined_call_operand.vmem [shape: f32[16,128], index: 0, kind: input, shape index: {}]
  %s1 = inlined_call_operand.vmem [shape: f32[128,32], index: 1, kind: input, shape index: {}]
  %s2 = inlined_call_operand.vmem [shape: f32[1,32], index: 2, kind: input, shape index: {}]
  %s3 = inlined_call_operand.vmem [shape: f32[16,32], index: 3, kind: input, shape index: {}]
  %s4 = inlined_call_operand.vmem [shape: f32[16,32], index: 4, kind: output, shape index: {}]
  %s5 = sld [smem:[#allocation0]]
  $region26: #{gpt2_forward.15} parent=0
    _
  %s7 = ssub.s32 1, %s5
  %s8 = scalar_select 0, %s7, %s5
  // Predicated region
  $region2: #{gpt2_forward.15} parent=0 // pred_check
    _
  $region3: #{gpt2_forward.15} parent=0 // pred_check_branch
    %10 = sbr.rel (0) target = $region5
  $region4: #{gpt2_forward.15} parent=0 // pred_region
    _
  $region5: #{gpt2_forward.15} parent=0 // pred_fallthru
    _
  // Predicated region
  $region6: #{gpt2_forward.15} parent=0 // pred_check
    _
  $region7: #{gpt2_forward.15} parent=0 // pred_check_branch
    %12 = sbr.rel (0) target = $region9
  $region8: #{gpt2_forward.15} parent=0 // pred_region
    _
  $region9: #{gpt2_forward.15} parent=0 // pred_fallthru
    _
  // Predicated region
  $region10: #{gpt2_forward.15} parent=0 // pred_check
    _
  $region11: #{gpt2_forward.15} parent=0 // pred_check_branch
    %14 = sbr.rel (0) target = $region13
  $region12: #{gpt2_forward.15} parent=0 // pred_region
    _
  $region13: #{gpt2_forward.15} parent=0 // pred_fallthru
    _
  // Predicated region
  $region14: #{gpt2_forward.15} parent=0 // pred_check
    _
  $region15: #{gpt2_forward.15} parent=0 // pred_check_branch
    %16 = sbr.rel (0) target = $region17
  $region16: #{gpt2_forward.15} parent=0 // pred_region
    _
  $region17: #{gpt2_forward.15} parent=0 // pred_fallthru
    _
  %v17 = vld [vmem:[%s0] sm:$0xff]
  %v18 = vld [vmem:[%s0 + $0x8] sm:$0xff]
  %v19 = vld [vmem:[%s1] sm:$0xff]
  %v20 = vld [vmem:[%s1 + $0x8] sm:$0xff]
  %v21 = vld [vmem:[%s1 + $0x10] sm:$0xff]
  %v22 = vld [vmem:[%s1 + $0x18] sm:$0xff]
  %v23 = vld [vmem:[%s1 + $0x20] sm:$0xff]
  %v24 = vld [vmem:[%s1 + $0x28] sm:$0xff]
  %v25 = vld [vmem:[%s1 + $0x30] sm:$0xff]
  %v26 = vld [vmem:[%s1 + $0x38] sm:$0xff]
  %v27 = vld [vmem:[%s1 + $0x40] sm:$0xff]
  %v28 = vld [vmem:[%s1 + $0x48] sm:$0xff]
  %v29 = vld [vmem:[%s1 + $0x50] sm:$0xff]
  %v30 = vld [vmem:[%s1 + $0x58] sm:$0xff]
  %v31 = vld [vmem:[%s1 + $0x60] sm:$0xff]
  %v32 = vld [vmem:[%s1 + $0x68] sm:$0xff]
  %v33 = vld [vmem:[%s1 + $0x70] sm:$0xff]
  %v34 = vld [vmem:[%s1 + $0x78] sm:$0xff]
  %v35 = vld [vmem:[%s2] sm:$0x1]
  %v37 = vlaneseq
  %v38 = vshrl.u32 %v37, 7
  %v39 = vsub.s32 0, %v38
  %v40 = vrot.slane %v35, %v39
  %42 = vmatprep.subr.mxu0 0.0
  %43 = vmatpush1.msra.mxu0 %v34
  %44 = vmatprep.subr.mxu0 0.0
  %45 = vmatpush1.msra.mxu0 %v33
  %46 = vmatprep.subr.mxu0 0.0
  %47 = vmatpush1.msra.mxu0 %v32
  %48 = vmatprep.subr.mxu0 0.0
  %49 = vmatpush1.msra.mxu0 %v31
  %50 = vmatprep.subr.mxu0 0.0
  %51 = vmatpush1.msra.mxu0 %v30
  %52 = vmatprep.subr.mxu0 0.0
  %53 = vmatpush1.msra.mxu0 %v29
  %54 = vmatprep.subr.mxu0 0.0
  %55 = vmatpush1.msra.mxu0 %v28
  %56 = vmatprep.subr.mxu0 0.0
  %57 = vmatpush1.msra.mxu0 %v27
  %58 = vmatprep.subr.mxu0 0.0
  %59 = vmatpush1.msra.mxu0 %v26
  %60 = vmatprep.subr.mxu0 0.0
  %61 = vmatpush1.msra.mxu0 %v25
  %62 = vmatprep.subr.mxu0 0.0
  %63 = vmatpush1.msra.mxu0 %v24
  %64 = vmatprep.subr.mxu0 0.0
  %65 = vmatpush1.msra.mxu0 %v23
  %66 = vmatprep.subr.mxu0 0.0
  %67 = vmatpush1.msra.mxu0 %v22
  %68 = vmatprep.subr.mxu0 0.0
  %69 = vmatpush1.msra.mxu0 %v21
  %70 = vmatprep.subr.mxu0 0.0
  %71 = vmatpush1.msra.mxu0 %v20
  %72 = vmatprep.subr.mxu0 0.0
  %73 = vmatpush1.msra.mxu0 %v19
  %74 = vmatprep.subr.mxu0 0.0
  %75 = vmatpush2.msra.mxu0 0.0
  %76 = vmatprep.subr.mxu0 0.0
  %77 = vmatpush2.msra.mxu0 0.0
  %78 = vmatprep.subr.mxu0 0.0
  %79 = vmatpush2.msra.mxu0 0.0
  %80 = vmatprep.subr.mxu0 0.0
  %81 = vmatpush2.msra.mxu0 0.0
  %82 = vmatprep.subr.mxu0 0.0
  %83 = vmatpush2.msra.mxu0 0.0
  %84 = vmatprep.subr.mxu0 0.0
  %85 = vmatpush2.msra.mxu0 0.0
  %86 = vmatprep.subr.mxu0 0.0
  %87 = vmatpush2.msra.mxu0 0.0
  %88 = vmatprep.subr.mxu0 0.0
  %89 = vmatpush2.msra.mxu0 0.0
  %90 = vmatprep.subr.mxu0 0.0
  %91 = vmatpush2.msra.mxu0 0.0
  %92 = vmatprep.subr.mxu0 0.0
  %93 = vmatpush2.msra.mxu0 0.0
  %94 = vmatprep.subr.mxu0 0.0
  %95 = vmatpush2.msra.mxu0 0.0
  %96 = vmatprep.subr.mxu0 0.0
  %97 = vmatpush2.msra.mxu0 0.0
  %98 = vmatprep.subr.mxu0 0.0
  %99 = vmatpush2.msra.mxu0 0.0
  %100 = vmatprep.subr.mxu0 0.0
  %101 = vmatpush2.msra.mxu0 0.0
  %102 = vmatprep.subr.mxu0 0.0
  %103 = vmatpush2.msra.mxu0 0.0
  %104 = vmatprep.subr.mxu0 0.0
  %105 = vmatpush2.msra.mxu0 0.0
  %106 = vmatprep.mubr.f32.mxu0 0.0
  %107 = vmatmul.mubr.f32.gmra.mxu0 %v17
  %v108 = vpop.f32.mrf.mxu0
  %v109 = vadd.f32 %v40, %v108
  %v110 = vpop.f32.mrf.mxu0
  %111 = vmatprep.mubr.f32.mxu0 0.0
  %112 = vmatmul.mubr.f32.gmra.mxu0 %v18
  %v113 = vpop.f32.mrf.mxu0
  %v114 = vadd.f32 %v40, %v113
  %v115 = vpop.f32.mrf.mxu0
  %116 = vdwg.mxu0
  %v117 = vld [vmem:[%s3] sm:$0xff]
  %v118 = vld [vmem:[%s3 + $0x8] sm:$0xff]
  %v119 = vadd.f32 %v109, %v117
  %v120 = vadd.f32 %v114, %v118
  %vm121 = vcmask 261120
  %122 = vst.msk [vmem:[%s4] sm:$0xff] %vm121, %v119
  %123 = vst.msk [vmem:[%s4 + $0x8] sm:$0xff] %vm121, %v120
  // Predicated region
  $region18: #{gpt2_forward.15} parent=0 // pred_check
    _
  $region19: #{gpt2_forward.15} parent=0 // pred_check_branch
    %125 = sbr.rel (0) target = $region21
  $region20: #{gpt2_forward.15} parent=0 // pred_region
    _
  $region21: #{gpt2_forward.15} parent=0 // pred_fallthru
    _
  // Predicated region
  $region22: #{gpt2_forward.15} parent=0 // pred_check
    _
  $region23: #{gpt2_forward.15} parent=0 // pred_check_branch
    %127 = sbr.rel (0) target = $region25
  $region24: #{gpt2_forward.15} parent=0 // pred_region
    _
  $region25: #{gpt2_forward.15} parent=0 // pred_fallthru
    _

// kernel: gpt2_forward.21
$region0: #{gpt2_forward.21}
  #allocation0 [shape = 'u32[]', space=smem, size = 0x4, offset = 0x4, fixed_abs, tag = 'smem constant byte address 0x4 - core index']
  #allocation1 [shape = 'u32[144,128]{1,0:T(1,128)}', space=vmem, size = 0x12000, scoped, tag = 'internal scratch']
  %s0 = inlined_call_operand.vmem [shape: f32[16,32], index: 0, kind: input, shape index: {}]
  %s1 = inlined_call_operand.vmem [shape: f32[1,32], index: 1, kind: input, shape index: {}]
  %s2 = inlined_call_operand.vmem [shape: f32[1,32], index: 2, kind: input, shape index: {}]
  %s3 = inlined_call_operand.vmem [shape: f32[32,128], index: 3, kind: input, shape index: {}]
  %s4 = inlined_call_operand.vmem [shape: f32[1,128], index: 4, kind: input, shape index: {}]
  %s5 = inlined_call_operand.hbm [shape: f32[16,128], index: 5, kind: output, shape index: {}]
  %s6 = sld [smem:[#allocation0]]
  $region30: #{gpt2_forward.21} parent=0
    _
  %s8 = ssub.s32 1, %s6
  %s9 = scalar_select 0, %s8, %s6
  $region1: #{gpt2_forward.21} parent=0
    #allocation2 [shape = 'u8[8192]{0}', space=vmem, size = 0x2000, scoped, tag = 'output window, operand 0, single buffered']
    #allocation3 [shape = 's32[1]{0}', space=sflag, size = 0x4, scoped, tag = 'scoped memory for gpt2_forward.21']
    %10 = vsyncpa [#allocation3], 0
    // Predicated region
    $region2: #{gpt2_forward.21} parent=1 // pred_check
      _
    $region3: #{gpt2_forward.21} parent=1 // pred_check_branch
      %12 = sbr.rel (0) target = $region5
    $region4: #{gpt2_forward.21} parent=1 // pred_region
      _
    $region5: #{gpt2_forward.21} parent=1 // pred_fallthru
      _
    // Predicated region
    $region6: #{gpt2_forward.21} parent=1 // pred_check
      _
    $region7: #{gpt2_forward.21} parent=1 // pred_check_branch
      %14 = sbr.rel (0) target = $region9
    $region8: #{gpt2_forward.21} parent=1 // pred_region
      _
    $region9: #{gpt2_forward.21} parent=1 // pred_fallthru
      _
    // Predicated region
    $region10: #{gpt2_forward.21} parent=1 // pred_check
      _
    $region11: #{gpt2_forward.21} parent=1 // pred_check_branch
      %16 = sbr.rel (0) target = $region13
    $region12: #{gpt2_forward.21} parent=1 // pred_region
      _
    $region13: #{gpt2_forward.21} parent=1 // pred_fallthru
      _
    // Predicated region
    $region14: #{gpt2_forward.21} parent=1 // pred_check
      _
    $region15: #{gpt2_forward.21} parent=1 // pred_check_branch
      %18 = sbr.rel (0) target = $region17
    $region16: #{gpt2_forward.21} parent=1 // pred_region
      _
    $region17: #{gpt2_forward.21} parent=1 // pred_fallthru
      _
    // Predicated region
    $region18: #{gpt2_forward.21} parent=1 // pred_check
      _
    $region19: #{gpt2_forward.21} parent=1 // pred_check_branch
      %20 = sbr.rel (0) target = $region21
    $region20: #{gpt2_forward.21} parent=1 // pred_region
      _
    $region21: #{gpt2_forward.21} parent=1 // pred_fallthru
      _
    %v21 = vld [vmem:[%s0] sm:$0xff]
    %v22 = vld [vmem:[%s0 + $0x8] sm:$0xff]
    %vm23 = vcmask 261120
    %v24 = vsel %vm23, %v21, 0.0
    %25 = vadd.xlane.f32.xlu0 %v24
    %v26 = vpop.xlane.xlu0 %25
    %v27 = vsel %vm23, %v22, 0.0
    %28 = vadd.xlane.f32.xlu0 %v27
    %v29 = vpop.xlane.xlu0 %28
    %v30 = vrcp.pop 32.0
    %v31 = vmul.f32 %v26, %v30
    %v32 = vmul.f32 %v29, %v30
    %v33 = vsub.f32 %v21, %v31
    %v34 = vsub.f32 %v22, %v32
    %v35 = vmul.f32 %v33, %v33
    %v36 = vmul.f32 %v34, %v34
    %v37 = vsel %vm23, %v35, 0.0
    %38 = vadd.xlane.f32.xlu0 %v37
    %v39 = vpop.xlane.xlu0 %38
    %v40 = vsel %vm23, %v36, 0.0
    %41 = vadd.xlane.f32.xlu0 %v40
    %v42 = vpop.xlane.xlu0 %41
    %v43 = vmul.f32 %v39, %v30
    %v44 = vmul.f32 %v42, %v30
    %v45 = vadd.f32 %v43, 1e-05
    %v46 = vadd.f32 %v44, 1e-05
    %v47 = vrsqrt.pop %v45
    %v48 = vmul.f32 %v45, %v47
    %vm49 = vcmp.eq.f32.partialorder %v45, inf
    %v50 = vsel %vm49, %v45, %v48
    %vm51 = vcmp.eq.f32.partialorder %v45, 0.0
    %v52 = vand.u32 %v45, 2147483648
    %v53 = vsel %vm51, %v52, %v50
    %v54 = vrsqrt.pop %v46
    %v55 = vmul.f32 %v46, %v54
    %vm56 = vcmp.eq.f32.partialorder %v46, inf
    %v57 = vsel %vm56, %v46, %v55
    %vm58 = vcmp.eq.f32.partialorder %v46, 0.0
    %v59 = vand.u32 %v46, 2147483648
    %v60 = vsel %vm58, %v59, %v57
    %v61 = vrcp.pop %v53
    %v62 = vmul.f32 %v33, %v61
    %v63 = vrcp.pop %v60
    %v64 = vmul.f32 %v34, %v63
    %v65 = vld [vmem:[%s1] sm:$0x1]
    %v67 = vlaneseq
    %v68 = vshrl.u32 %v67, 7
    %v69 = vsub.s32 0, %v68
    %v70 = vrot.slane %v65, %v69
    %v72 = vmul.f32 %v62, %v70
    %v73 = vmul.f32 %v64, %v70
    %v74 = vld [vmem:[%s2] sm:$0x1]
    %v76 = vlaneseq
    %v77 = vshrl.u32 %v76, 7
    %v78 = vsub.s32 0, %v77
    %v79 = vrot.slane %v74, %v78
    %v81 = vadd.f32 %v72, %v79
    %v82 = vadd.f32 %v73, %v79
    %v83 = vld [vmem:[%s3] sm:$0xff]
    %v84 = vld [vmem:[%s3 + $0x8] sm:$0xff]
    %v85 = vld [vmem:[%s3 + $0x10] sm:$0xff]
    %v86 = vld [vmem:[%s3 + $0x18] sm:$0xff]
    %v87 = vld [vmem:[%s4] sm:$0x1]
    %v89 = vlaneseq
    %v90 = vshrl.u32 %v89, 7
    %v91 = vsub.s32 0, %v90
    %v92 = vrot.slane %v87, %v91
    %v95 = vsel %vm23, %v81, 0
    %v98 = vsel %vm23, %v82, 0
    %100 = vmatprep.subr.mxu0 0.0
    %101 = vmatpush1.msra.mxu0 0.0
    %102 = vmatprep.subr.mxu0 0.0
    %103 = vmatpush1.msra.mxu0 0.0
    %104 = vmatprep.subr.mxu0 0.0
    %105 = vmatpush1.msra.mxu0 0.0
    %106 = vmatprep.subr.mxu0 0.0
    %107 = vmatpush1.msra.mxu0 0.0
    %108 = vmatprep.subr.mxu0 0.0
    %109 = vmatpush1.msra.mxu0 0.0
    %110 = vmatprep.subr.mxu0 0.0
    %111 = vmatpush1.msra.mxu0 0.0
    %112 = vmatprep.subr.mxu0 0.0
    %113 = vmatpush1.msra.mxu0 0.0
    %114 = vmatprep.subr.mxu0 0.0
    %115 = vmatpush1.msra.mxu0 0.0
    %116 = vmatprep.subr.mxu0 0.0
    %117 = vmatpush1.msra.mxu0 0.0
    %118 = vmatprep.subr.mxu0 0.0
    %119 = vmatpush1.msra.mxu0 0.0
    %120 = vmatprep.subr.mxu0 0.0
    %121 = vmatpush1.msra.mxu0 0.0
    %122 = vmatprep.subr.mxu0 0.0
    %123 = vmatpush1.msra.mxu0 0.0
    %124 = vmatprep.subr.mxu0 0.0
    %125 = vmatpush1.msra.mxu0 %v86
    %126 = vmatprep.subr.mxu0 0.0
    %127 = vmatpush1.msra.mxu0 %v85
    %128 = vmatprep.subr.mxu0 0.0
    %129 = vmatpush1.msra.mxu0 %v84
    %130 = vmatprep.subr.mxu0 0.0
    %131 = vmatpush1.msra.mxu0 %v83
    %132 = vmatprep.subr.mxu0 0.0
    %133 = vmatpush2.msra.mxu0 0.0
    %134 = vmatprep.subr.mxu0 0.0
    %135 = vmatpush2.msra.mxu0 0.0
    %136 = vmatprep.subr.mxu0 0.0
    %137 = vmatpush2.msra.mxu0 0.0
    %138 = vmatprep.subr.mxu0 0.0
    %139 = vmatpush2.msra.mxu0 0.0
    %140 = vmatprep.subr.mxu0 0.0
    %141 = vmatpush2.msra.mxu0 0.0
    %142 = vmatprep.subr.mxu0 0.0
    %143 = vmatpush2.msra.mxu0 0.0
    %144 = vmatprep.subr.mxu0 0.0
    %145 = vmatpush2.msra.mxu0 0.0
    %146 = vmatprep.subr.mxu0 0.0
    %147 = vmatpush2.msra.mxu0 0.0
    %148 = vmatprep.subr.mxu0 0.0
    %149 = vmatpush2.msra.mxu0 0.0
    %150 = vmatprep.subr.mxu0 0.0
    %151 = vmatpush2.msra.mxu0 0.0
    %152 = vmatprep.subr.mxu0 0.0
    %153 = vmatpush2.msra.mxu0 0.0
    %154 = vmatprep.subr.mxu0 0.0
    %155 = vmatpush2.msra.mxu0 0.0
    %156 = vmatprep.subr.mxu0 0.0
    %157 = vmatpush2.msra.mxu0 0.0
    %158 = vmatprep.subr.mxu0 0.0
    %159 = vmatpush2.msra.mxu0 0.0
    %160 = vmatprep.subr.mxu0 0.0
    %161 = vmatpush2.msra.mxu0 0.0
    %162 = vmatprep.subr.mxu0 0.0
    %163 = vmatpush2.msra.mxu0 0.0
    %164 = vmatprep.mubr.f32.mxu0 0.0
    %165 = vmatmul.mubr.f32.gmra.mxu0 %v95
    %v166 = vpop.f32.mrf.mxu0
    %v167 = vadd.f32 %v92, %v166
    %v168 = vpop.f32.mrf.mxu0
    %169 = vmatprep.mubr.f32.mxu0 0.0
    %170 = vmatmul.mubr.f32.gmra.mxu0 %v98
    %v171 = vpop.f32.mrf.mxu0
    %v172 = vadd.f32 %v92, %v171
    %v173 = vpop.f32.mrf.mxu0
    %174 = vdwg.mxu0
    %175 = vst [vmem:[#allocation2] sm:$0xff] %v167
    %176 = vst [vmem:[#allocation2 + $0x8] sm:$0xff] %v172
    // Predicated region
    $region22: #{gpt2_forward.21} parent=1 // pred_check
      _
    $region23: #{gpt2_forward.21} parent=1 // pred_check_branch
      %178 = sbr.rel (0) target = $region25
    $region24: #{gpt2_forward.21} parent=1 // pred_region
      %s180 = ssub.s32 256, 256
      %181 = vsyncadd [#allocation3], %s180
      %s182 = sshll.u32 [#allocation2], 4
      %s183 = int_to_ptr.vmem [resolvable:$true] %s182
      %188 = dma.vmem_to_hbm [thread:$0]  %s183, 256, %s5, [#allocation3], 128, 128, 8
    $region25: #{gpt2_forward.21} parent=1 // pred_fallthru
      _
    // Predicated region
    $region26: #{gpt2_forward.21} parent=1 // pred_check
      _
    $region27: #{gpt2_forward.21} parent=1 // pred_check_branch
      %190 = sbr.rel (0) target = $region29
    $region28: #{gpt2_forward.21} parent=1 // pred_region
      %191 = dma.done [#allocation3], 256
    $region29: #{gpt2_forward.21} parent=1 // pred_fallthru
      _
    %192 = vsyncpa [#allocation3], 1

</llo_original>
